<compile_context>
chip_gen: v7x
topology: tpu7x:2x2x1
jax: 0.10.0
libtpu: 0.0.40
codegen_flags: <defaults>
</compile_context>

<pallas_src>
import jax
import jax.numpy as jnp
from jax.experimental import pallas as pl
from jax.experimental.pallas import tpu as pltpu

# ----------------------------- problem sizes --------------------------------
B = 8            # batch (fills the 8 vreg sublanes)
L = 8            # question length (seq)
H = 32           # bert hidden size
E = 16           # number of entities (Esize)
R = 8            # number of relations
T = 24           # number of triples (Tsize)
NUM_STEPS = 2    # self.num_steps

PAD = 128        # lane width of packed slabs


def _r8(x):
    return ((x + 7) // 8) * 8


# --- packed weight slab row layout (all offsets multiples of 8 sublanes) ----
R_WQ = 0                       # [H, 2H+S]  step_0 | step_1 | hop weights
R_BQ = R_WQ + _r8(H)           # [1, 2H+S]  fused biases
R_WREL = R_BQ + 8              # [H, R]     rel_classifier weight
R_BREL = R_WREL + _r8(H)       # [1, R]     rel_classifier bias
R_MSUBJ = R_BREL + 8           # [E, T]     Msubj^T
R_MREL = R_MSUBJ + _r8(E)      # [R, T]     Mrel^T
R_MOBJ = R_MREL + _r8(R)       # [T, E]     Mobj
W_ROWS = _r8(R_MOBJ + T)       # 128

# --- packed activation slab lane layout ([B, 128]) ---------------------------
A_QEMB = 0                     # H lanes
A_MASK = 32                    # L lanes
A_HEAD = 64                    # E lanes

# --- packed output slab lane layout ([B, 128]) --------------------------------
O_ESCORE = 0                                   # E
O_WORD = O_ESCORE + E                          # NUM_STEPS * L
O_REL = O_WORD + NUM_STEPS * L                 # NUM_STEPS * R
O_ENT = O_REL + NUM_STEPS * R                  # NUM_STEPS * E
O_HOP = O_ENT + NUM_STEPS * E                  # NUM_STEPS
OUT_COLS = O_HOP + NUM_STEPS                   # 82
OUT_PAD = PAD


# ------------------------------- the kernel ---------------------------------
def transfernet_kernel(act_ref, qw_ref, w_ref, out_ref):
    # ---- unpack activations (one [B, 128] tile) ----
    act = act_ref[...]
    q_emb = act[:, A_QEMB:A_QEMB + H]                      # [B, H]
    mask = act[:, A_MASK:A_MASK + L]                       # [B, L]
    heads = act[:, A_HEAD:A_HEAD + E]                      # [B, E]
    q_word = qw_ref[...]                                   # [B, L, H]

    # ---- weights (static, sublane-aligned slices of one [128, 128] slab) ----
    wq = w_ref[R_WQ:R_WQ + H, :]                           # [H, 128]
    bq = w_ref[R_BQ:R_BQ + 1, :]                           # [1, 128]
    w_rel = w_ref[R_WREL:R_WREL + H, 0:R]                  # [H, R]
    b_rel = w_ref[R_BREL:R_BREL + 1, 0:R]                  # [1, R]
    msubjT = w_ref[R_MSUBJ:R_MSUBJ + E, 0:T]               # [E, T]
    mrelT = w_ref[R_MREL:R_MREL + R, 0:T]                  # [R, T]
    mobj = w_ref[R_MOBJ:R_MOBJ + T, 0:E]                   # [T, E]

    # zero the whole output tile once (covers the unused pad lanes)
    out_ref[...] = jnp.zeros((B, OUT_PAD), jnp.float32)

    # ---- fused q_emb projection (both steps + hop selector), one matmul ----
    qproj = jnp.dot(q_emb, wq, preferred_element_type=jnp.float32) + bq  # [B,128]
    cq_all = jnp.tanh(qproj[:, 0:NUM_STEPS * H])           # [B, 2H]

    # ---- word attention logits for both steps (VPU mul + lane reduce) ----
    ql_list = []
    for t in range(NUM_STEPS):
        cq_t = cq_all[:, t * H:(t + 1) * H]                # [B, H]
        ql_list.append(jnp.sum(cq_t[:, None, :] * q_word, axis=2))  # [B, L]
    ql = jnp.concatenate(ql_list, axis=0)                  # [S*B, L]
    mask2 = jnp.concatenate([mask] * NUM_STEPS, axis=0)    # [S*B, L]

    # one masked, renormalized softmax pass for both steps
    mx = jnp.max(ql, axis=-1, keepdims=True)
    ex = jnp.exp(ql - mx)
    qd = ex * pl.reciprocal(jnp.sum(ex, axis=-1, keepdims=True), approx=True)
    qd = qd * mask2
    qd = qd * pl.reciprocal(
        jnp.sum(qd, axis=-1, keepdims=True) + 1e-6, approx=True)   # [S*B, L]

    # ---- ctx_h for both steps (VPU mul + sublane reduce), one rel matmul ----
    ctx_list = []
    for t in range(NUM_STEPS):
        qd_t = qd[t * B:(t + 1) * B]                        # [B, L]
        ctx_list.append(jnp.sum(qd_t[:, :, None] * q_word, axis=1))  # [B, H]
    ctx = jnp.concatenate(ctx_list, axis=0)                 # [S*B, H]
    rel_logit = (
        jnp.dot(ctx, w_rel, preferred_element_type=jnp.float32) + b_rel
    )                                                       # [S*B, R]
    rel = 0.5 * jnp.tanh(0.5 * rel_logit) + 0.5             # sigmoid via tanh

    # r-projection for both steps in one matmul (off the serial chain)
    rt = jnp.dot(rel, mrelT, preferred_element_type=jnp.float32)  # [S*B, T]

    # ---- hop attention (exact softmax over NUM_STEPS lanes) ----
    hop_logit = qproj[:, NUM_STEPS * H:NUM_STEPS * H + NUM_STEPS]  # [B, S]
    hmx = jnp.max(hop_logit, axis=-1, keepdims=True)
    hex_ = jnp.exp(hop_logit - hmx)
    hop_attn = hex_ / jnp.sum(hex_, axis=-1, keepdims=True)        # [B, S]

    # ---- follow recurrence: the only serial dependency chain ----
    last_e = heads
    e_score = jnp.zeros((B, E), jnp.float32)
    for t in range(NUM_STEPS):  # static hyperparameter -> unrolled
        et = jnp.dot(last_e, msubjT, preferred_element_type=jnp.float32)  # [B,T]
        x = et * rt[t * B:(t + 1) * B]                                    # [B,T]
        last_e = jnp.minimum(
            jnp.dot(x, mobj, preferred_element_type=jnp.float32), 1.0)    # [B,E]
        e_score = e_score + hop_attn[:, t:t + 1] * last_e
        out_ref[:, O_ENT + t * E:O_ENT + (t + 1) * E] = last_e

    # ---- direct static-offset stores of the remaining outputs ----
    out_ref[:, O_ESCORE:O_ESCORE + E] = e_score
    for t in range(NUM_STEPS):
        out_ref[:, O_WORD + t * L:O_WORD + (t + 1) * L] = qd[t * B:(t + 1) * B]
        out_ref[:, O_REL + t * R:O_REL + (t + 1) * R] = rel[t * B:(t + 1) * B]
    out_ref[:, O_HOP:O_HOP + NUM_STEPS] = hop_attn


# --------------------------- host-side weight packing -------------------------
def make_weight_slab(params, msubj, mrel, mobj):
    """Build the packed [128, 128] weight slab ONCE at init (not per call)."""
    (w_step, b_step, w_rel, b_rel, w_hop, b_hop) = params
    slab = jnp.zeros((W_ROWS, PAD), jnp.float32)
    for t in range(NUM_STEPS):
        slab = slab.at[R_WQ:R_WQ + H, t * H:(t + 1) * H].set(w_step[t])
        slab = slab.at[R_BQ, t * H:(t + 1) * H].set(b_step[t, 0])
    slab = slab.at[R_WQ:R_WQ + H, NUM_STEPS * H:NUM_STEPS * H + NUM_STEPS].set(w_hop)
    slab = slab.at[R_BQ, NUM_STEPS * H:NUM_STEPS * H + NUM_STEPS].set(b_hop[0])
    slab = slab.at[R_WREL:R_WREL + H, 0:R].set(w_rel)
    slab = slab.at[R_BREL, 0:R].set(b_rel[0])
    slab = slab.at[R_MSUBJ:R_MSUBJ + E, 0:T].set(msubj.T)
    slab = slab.at[R_MREL:R_MREL + R, 0:T].set(mrel.T)
    slab = slab.at[R_MOBJ:R_MOBJ + T, 0:E].set(mobj)
    return slab


# ------------------------------ host wrapper ---------------------------------
@jax.jit
def transfernet_forward(q_emb, q_word, mask, heads, w_slab):
    # pack q_emb | mask | heads into one [B, 128] activation slab (1 DMA)
    act = jnp.zeros((B, PAD), jnp.float32)
    act = act.at[:, A_QEMB:A_QEMB + H].set(q_emb)
    act = act.at[:, A_MASK:A_MASK + L].set(mask)
    act = act.at[:, A_HEAD:A_HEAD + E].set(heads)

    vmem = pl.BlockSpec(memory_space=pltpu.MemorySpace.VMEM)
    slab = pl.pallas_call(
        transfernet_kernel,
        out_shape=jax.ShapeDtypeStruct((B, OUT_PAD), jnp.float32),
        in_specs=[vmem, vmem, vmem],
        out_specs=vmem,
    )(act, q_word, w_slab)

    # split the lane-dense slab back into the module's outputs (layout plumbing)
    e_score = slab[:, O_ESCORE:O_ESCORE + E]
    word_attns = slab[:, O_WORD:O_WORD + NUM_STEPS * L].reshape(
        B, NUM_STEPS, L).transpose(1, 0, 2)
    rel_probs = slab[:, O_REL:O_REL + NUM_STEPS * R].reshape(
        B, NUM_STEPS, R).transpose(1, 0, 2)
    ent_probs = slab[:, O_ENT:O_ENT + NUM_STEPS * E].reshape(
        B, NUM_STEPS, E).transpose(1, 0, 2)
    hop_attn = slab[:, O_HOP:O_HOP + NUM_STEPS]
    return {
        "e_score": e_score,
        "word_attns": word_attns,
        "rel_probs": rel_probs,
        "ent_probs": ent_probs,
        "hop_attn": hop_attn,
    }


# --------------------------- pure-JAX reference -------------------------------
def transfernet_ref(q_emb, q_word, mask, heads, params, msubj, mrel, mobj):
    (w_step, b_step, w_rel, b_rel, w_hop, b_hop) = params
    last_e = heads
    word_attns, rel_probs, ent_probs = [], [], []
    for t in range(NUM_STEPS):
        cq = jnp.tanh(q_emb @ w_step[t] + b_step[t, 0])
        q_logits = jnp.sum(cq[:, None, :] * q_word, axis=2)
        q_dist = jax.nn.softmax(q_logits, axis=1)
        q_dist = q_dist * mask
        q_dist = q_dist / (jnp.sum(q_dist, axis=1, keepdims=True) + 1e-6)
        word_attns.append(q_dist)
        ctx = jnp.einsum("bl,blh->bh", q_dist, q_word)
        rel = jax.nn.sigmoid(ctx @ w_rel + b_rel[0])
        rel_probs.append(rel)
        x = (last_e @ msubj.T) * (rel @ mrel.T)
        last_e = x @ mobj
        m = (last_e > 1.0).astype(jnp.float32)
        last_e = last_e / (m * last_e + (1.0 - m))
        ent_probs.append(last_e)
    hop_attn = jax.nn.softmax(q_emb @ w_hop + b_hop[0], axis=1)
    e_score = sum(hop_attn[:, t:t + 1] * ent_probs[t] for t in range(NUM_STEPS))
    return (e_score, jnp.stack(word_attns), jnp.stack(rel_probs),
            jnp.stack(ent_probs), hop_attn)


# ------------------------------------ main ------------------------------------
if __name__ == "__main__":
    key = jax.random.PRNGKey(0)
    ks = jax.random.split(key, 12)

    # "BERT" outputs (synthetic, deterministic)
    q_emb = jax.random.normal(ks[0], (B, H), jnp.float32)
    q_word = jax.random.normal(ks[1], (B, L, H), jnp.float32)
    # attention mask: first few tokens valid
    lengths = jnp.array([6, 4, 8, 3, 5, 7, 2, 6], jnp.int32)
    mask = (jnp.arange(L)[None, :] < lengths[:, None]).astype(jnp.float32)
    # head entity distribution: one-hot per batch element
    head_ids = jnp.array([3, 7, 0, 12, 5, 9, 14, 1], jnp.int32)
    heads = jax.nn.one_hot(head_ids, E, dtype=jnp.float32)

    # Deterministic synthetic triples -> dense one-hot Msubj / Mrel / Mobj
    tri_s = jnp.arange(T, dtype=jnp.int32) % E
    tri_r = (jnp.arange(T, dtype=jnp.int32) * 5 + 1) % R
    tri_o = (jnp.arange(T, dtype=jnp.int32) * 3 + 2) % E
    msubj = jax.nn.one_hot(tri_s, E, dtype=jnp.float32)   # [T, E]
    mrel = jax.nn.one_hot(tri_r, R, dtype=jnp.float32)    # [T, R]
    mobj = jax.nn.one_hot(tri_o, E, dtype=jnp.float32)    # [T, E]

    # Parameters (torch-Linear-like uniform init, stored as [in, out])
    def lin_init(kw, kb, fan_in, shape_w, shape_b):
        bound = 1.0 / jnp.sqrt(jnp.float32(fan_in))
        w = jax.random.uniform(kw, shape_w, jnp.float32, -bound, bound)
        b = jax.random.uniform(kb, shape_b, jnp.float32, -bound, bound)
        return w, b

    w_step, b_step = lin_init(ks[2], ks[3], H, (NUM_STEPS, H, H), (NUM_STEPS, 1, H))
    w_rel, b_rel = lin_init(ks[4], ks[5], H, (H, R), (1, R))
    w_hop, b_hop = lin_init(ks[6], ks[7], H, (H, NUM_STEPS), (1, NUM_STEPS))
    params = (w_step, b_step, w_rel, b_rel, w_hop, b_hop)

    # fused/packed weights built ONCE (module-init time), outside the forward
    w_slab = make_weight_slab(params, msubj, mrel, mobj)

    out = transfernet_forward(q_emb, q_word, mask, heads, w_slab)
    jax.block_until_ready(out)

    # correctness check against a pure-JAX reference
    # (atol 2e-3: the word-attention path keeps EUP approx reciprocals; the
    #  sigmoid and hop softmax are now exact)
    ref = transfernet_ref(q_emb, q_word, mask, heads, params, msubj, mrel, mobj)
    got = (out["e_score"], out["word_attns"], out["rel_probs"],
           out["ent_probs"], out["hop_attn"])
    for g, r in zip(got, ref):
        assert jnp.allclose(g, r, atol=2e-3, rtol=2e-3), "mismatch vs reference"

    print("KERNEL_OK")
</pallas_src>

<mosaic_0001>
module attributes {stable_mosaic.version = 11 : i64} {
  func.func @transfernet_kernel(%arg0: memref<8x128xf32, #tpu.memory_space<vmem>>, %arg1: memref<8x8x32xf32, #tpu.memory_space<vmem>>, %arg2: memref<128x128xf32, #tpu.memory_space<vmem>>, %arg3: memref<8x128xf32, #tpu.memory_space<vmem>>) attributes {dimension_semantics = [], scalar_prefetch = 0 : i64, scratch_operands = 0 : i64, tpu.core_type = #tpu.core_type<tc>} {
    %c0 = arith.constant 0 : index
    %c0_0 = arith.constant 0 : index
    %0 = vector.load %arg0[%c0, %c0_0] : memref<8x128xf32, #tpu.memory_space<vmem>>, vector<8x128xf32>
    %1 = vector.extract_strided_slice %0 {offsets = [0, 0], sizes = [8, 32], strides = [1, 1]} : vector<8x128xf32> to vector<8x32xf32>
    %2 = vector.extract_strided_slice %0 {offsets = [0, 32], sizes = [8, 8], strides = [1, 1]} : vector<8x128xf32> to vector<8x8xf32>
    %3 = vector.extract_strided_slice %0 {offsets = [0, 64], sizes = [8, 16], strides = [1, 1]} : vector<8x128xf32> to vector<8x16xf32>
    %c0_1 = arith.constant 0 : index
    %c0_2 = arith.constant 0 : index
    %c0_3 = arith.constant 0 : index
    %4 = vector.load %arg1[%c0_1, %c0_2, %c0_3] : memref<8x8x32xf32, #tpu.memory_space<vmem>>, vector<8x8x32xf32>
    %c0_4 = arith.constant 0 : index
    %c0_5 = arith.constant 0 : index
    %5 = vector.load %arg2[%c0_4, %c0_5] : memref<128x128xf32, #tpu.memory_space<vmem>>, vector<32x128xf32>
    %c32 = arith.constant 32 : index
    %c0_6 = arith.constant 0 : index
    %6 = vector.load %arg2[%c32, %c0_6] : memref<128x128xf32, #tpu.memory_space<vmem>>, vector<1x128xf32>
    %c40 = arith.constant 40 : index
    %c0_7 = arith.constant 0 : index
    %7 = vector.load %arg2[%c40, %c0_7] : memref<128x128xf32, #tpu.memory_space<vmem>>, vector<32x8xf32>
    %c72 = arith.constant 72 : index
    %c0_8 = arith.constant 0 : index
    %8 = vector.load %arg2[%c72, %c0_8] : memref<128x128xf32, #tpu.memory_space<vmem>>, vector<1x8xf32>
    %c80 = arith.constant 80 : index
    %c0_9 = arith.constant 0 : index
    %9 = vector.load %arg2[%c80, %c0_9] : memref<128x128xf32, #tpu.memory_space<vmem>>, vector<16x24xf32>
    %c96 = arith.constant 96 : index
    %c0_10 = arith.constant 0 : index
    %10 = vector.load %arg2[%c96, %c0_10] : memref<128x128xf32, #tpu.memory_space<vmem>>, vector<8x24xf32>
    %c104 = arith.constant 104 : index
    %c0_11 = arith.constant 0 : index
    %11 = vector.load %arg2[%c104, %c0_11] : memref<128x128xf32, #tpu.memory_space<vmem>>, vector<24x16xf32>
    %cst = arith.constant 0.000000e+00 : f32
    %12 = vector.broadcast %cst : f32 to vector<8x128xf32>
    %c0_12 = arith.constant 0 : index
    %c0_13 = arith.constant 0 : index
    %13 = vector.load %arg3[%c0_12, %c0_13] : memref<8x128xf32, #tpu.memory_space<vmem>>, vector<8x128xf32>
    tpu.vector_store %arg3[%c0_12, %c0_13], %12 {strides = array<i32>} : memref<8x128xf32, #tpu.memory_space<vmem>>, vector<8x128xf32>,
    %cst_14 = arith.constant dense<0.000000e+00> : vector<8x128xf32>
    %14 = tpu.matmul %1, %5, %cst_14 {dimension_numbers = #tpu.dot_dimension_numbers<[1], [0], [0], [1], [0, 0, 1, 1], [], []>} : vector<8x32xf32>, vector<32x128xf32>, vector<8x128xf32> -> vector<8x128xf32>
    %15 = vector.broadcast %6 : vector<1x128xf32> to vector<8x128xf32>
    %16 = arith.addf %14, %15 : vector<8x128xf32>
    %17 = vector.extract_strided_slice %16 {offsets = [0, 0], sizes = [8, 64], strides = [1, 1]} : vector<8x128xf32> to vector<8x64xf32>
    %18 = math.tanh %17 : vector<8x64xf32>
    %19 = vector.extract_strided_slice %18 {offsets = [0, 0], sizes = [8, 32], strides = [1, 1]} : vector<8x64xf32> to vector<8x32xf32>
    %20 = vector.shape_cast %19 : vector<8x32xf32> to vector<8x1x32xf32>
    %21 = vector.broadcast %20 : vector<8x1x32xf32> to vector<8x8x32xf32>
    %22 = arith.mulf %21, %4 : vector<8x8x32xf32>
    %cst_15 = arith.constant dense<0.000000e+00> : vector<8x8xf32>
    %23 = vector.multi_reduction <add>, %22, %cst_15 [2] : vector<8x8x32xf32> to vector<8x8xf32>
    %24 = vector.extract_strided_slice %18 {offsets = [0, 32], sizes = [8, 32], strides = [1, 1]} : vector<8x64xf32> to vector<8x32xf32>
    %25 = vector.shape_cast %24 : vector<8x32xf32> to vector<8x1x32xf32>
    %26 = vector.broadcast %25 : vector<8x1x32xf32> to vector<8x8x32xf32>
    %27 = arith.mulf %26, %4 : vector<8x8x32xf32>
    %cst_16 = arith.constant dense<0.000000e+00> : vector<8x8xf32>
    %28 = vector.multi_reduction <add>, %27, %cst_16 [2] : vector<8x8x32xf32> to vector<8x8xf32>
    %29 = tpu.concatenate %23, %28 in 0 : vector<8x8xf32>, vector<8x8xf32> -> vector<16x8xf32>
    %30 = tpu.concatenate %2, %2 in 0 : vector<8x8xf32>, vector<8x8xf32> -> vector<16x8xf32>
    %cst_17 = arith.constant dense<0xFF800000> : vector<16xf32>
    %31 = vector.multi_reduction <maximumf>, %29, %cst_17 [1] : vector<16x8xf32> to vector<16xf32>
    %32 = vector.shape_cast %31 : vector<16xf32> to vector<16x1xf32>
    %33 = vector.broadcast %32 : vector<16x1xf32> to vector<16x8xf32>
    %34 = arith.subf %29, %33 : vector<16x8xf32>
    %35 = math.exp %34 : vector<16x8xf32>
    %cst_18 = arith.constant dense<0.000000e+00> : vector<16xf32>
    %36 = vector.multi_reduction <add>, %35, %cst_18 [1] : vector<16x8xf32> to vector<16xf32>
    %37 = vector.shape_cast %36 : vector<16xf32> to vector<16x1xf32>
    %38 = tpu.reciprocal %37 {approx = true} : vector<16x1xf32> -> vector<16x1xf32>
    %39 = vector.broadcast %38 : vector<16x1xf32> to vector<16x8xf32>
    %40 = arith.mulf %35, %39 : vector<16x8xf32>
    %41 = arith.mulf %40, %30 : vector<16x8xf32>
    %cst_19 = arith.constant dense<0.000000e+00> : vector<16xf32>
    %42 = vector.multi_reduction <add>, %41, %cst_19 [1] : vector<16x8xf32> to vector<16xf32>
    %43 = vector.shape_cast %42 : vector<16xf32> to vector<16x1xf32>
    %cst_20 = arith.constant 9.99999997E-7 : f32
    %44 = vector.broadcast %cst_20 : f32 to vector<16x1xf32>
    %45 = arith.addf %43, %44 : vector<16x1xf32>
    %46 = tpu.reciprocal %45 {approx = true} : vector<16x1xf32> -> vector<16x1xf32>
    %47 = vector.broadcast %46 : vector<16x1xf32> to vector<16x8xf32>
    %48 = arith.mulf %41, %47 : vector<16x8xf32>
    %49 = vector.extract_strided_slice %48 {offsets = [0, 0], sizes = [8, 8], strides = [1, 1]} : vector<16x8xf32> to vector<8x8xf32>
    %50 = vector.shape_cast %49 : vector<8x8xf32> to vector<8x8x1xf32>
    %51 = vector.broadcast %50 : vector<8x8x1xf32> to vector<8x8x32xf32>
    %52 = arith.mulf %51, %4 : vector<8x8x32xf32>
    %cst_21 = arith.constant dense<0.000000e+00> : vector<8x32xf32>
    %53 = vector.multi_reduction <add>, %52, %cst_21 [1] : vector<8x8x32xf32> to vector<8x32xf32>
    %54 = vector.extract_strided_slice %48 {offsets = [8, 0], sizes = [8, 8], strides = [1, 1]} : vector<16x8xf32> to vector<8x8xf32>
    %55 = vector.shape_cast %54 : vector<8x8xf32> to vector<8x8x1xf32>
    %56 = vector.broadcast %55 : vector<8x8x1xf32> to vector<8x8x32xf32>
    %57 = arith.mulf %56, %4 : vector<8x8x32xf32>
    %cst_22 = arith.constant dense<0.000000e+00> : vector<8x32xf32>
    %58 = vector.multi_reduction <add>, %57, %cst_22 [1] : vector<8x8x32xf32> to vector<8x32xf32>
    %59 = tpu.concatenate %53, %58 in 0 : vector<8x32xf32>, vector<8x32xf32> -> vector<16x32xf32>
    %cst_23 = arith.constant dense<0.000000e+00> : vector<16x8xf32>
    %60 = tpu.matmul %59, %7, %cst_23 {dimension_numbers = #tpu.dot_dimension_numbers<[1], [0], [0], [1], [0, 0, 1, 1], [], []>} : vector<16x32xf32>, vector<32x8xf32>, vector<16x8xf32> -> vector<16x8xf32>
    %61 = vector.broadcast %8 : vector<1x8xf32> to vector<16x8xf32>
    %62 = arith.addf %60, %61 : vector<16x8xf32>
    %cst_24 = arith.constant 5.000000e-01 : f32
    %63 = vector.broadcast %cst_24 : f32 to vector<16x8xf32>
    %64 = arith.mulf %63, %62 : vector<16x8xf32>
    %65 = math.tanh %64 : vector<16x8xf32>
    %cst_25 = arith.constant 5.000000e-01 : f32
    %66 = vector.broadcast %cst_25 : f32 to vector<16x8xf32>
    %67 = arith.mulf %66, %65 : vector<16x8xf32>
    %cst_26 = arith.constant 5.000000e-01 : f32
    %68 = vector.broadcast %cst_26 : f32 to vector<16x8xf32>
    %69 = arith.addf %67, %68 : vector<16x8xf32>
    %cst_27 = arith.constant dense<0.000000e+00> : vector<16x24xf32>
    %70 = tpu.matmul %69, %10, %cst_27 {dimension_numbers = #tpu.dot_dimension_numbers<[1], [0], [0], [1], [0, 0, 1, 1], [], []>} : vector<16x8xf32>, vector<8x24xf32>, vector<16x24xf32> -> vector<16x24xf32>
    %71 = vector.extract_strided_slice %16 {offsets = [0, 64], sizes = [8, 2], strides = [1, 1]} : vector<8x128xf32> to vector<8x2xf32>
    %cst_28 = arith.constant dense<0xFF800000> : vector<8xf32>
    %72 = vector.multi_reduction <maximumf>, %71, %cst_28 [1] : vector<8x2xf32> to vector<8xf32>
    %73 = vector.shape_cast %72 : vector<8xf32> to vector<8x1xf32>
    %74 = vector.broadcast %73 : vector<8x1xf32> to vector<8x2xf32>
    %75 = arith.subf %71, %74 : vector<8x2xf32>
    %76 = math.exp %75 : vector<8x2xf32>
    %cst_29 = arith.constant dense<0.000000e+00> : vector<8xf32>
    %77 = vector.multi_reduction <add>, %76, %cst_29 [1] : vector<8x2xf32> to vector<8xf32>
    %78 = vector.shape_cast %77 : vector<8xf32> to vector<8x1xf32>
    %79 = vector.broadcast %78 : vector<8x1xf32> to vector<8x2xf32>
    %80 = arith.divf %76, %79 : vector<8x2xf32>
    %cst_30 = arith.constant 0.000000e+00 : f32
    %81 = vector.broadcast %cst_30 : f32 to vector<8x16xf32>
    %cst_31 = arith.constant dense<0.000000e+00> : vector<8x24xf32>
    %82 = tpu.matmul %3, %9, %cst_31 {dimension_numbers = #tpu.dot_dimension_numbers<[1], [0], [0], [1], [0, 0, 1, 1], [], []>} : vector<8x16xf32>, vector<16x24xf32>, vector<8x24xf32> -> vector<8x24xf32>
    %83 = vector.extract_strided_slice %70 {offsets = [0, 0], sizes = [8, 24], strides = [1, 1]} : vector<16x24xf32> to vector<8x24xf32>
    %84 = arith.mulf %82, %83 : vector<8x24xf32>
    %cst_32 = arith.constant dense<0.000000e+00> : vector<8x16xf32>
    %85 = tpu.matmul %84, %11, %cst_32 {dimension_numbers = #tpu.dot_dimension_numbers<[1], [0], [0], [1], [0, 0, 1, 1], [], []>} : vector<8x24xf32>, vector<24x16xf32>, vector<8x16xf32> -> vector<8x16xf32>
    %cst_33 = arith.constant 1.000000e+00 : f32
    %86 = vector.broadcast %cst_33 : f32 to vector<8x16xf32>
    %87 = arith.minimumf %85, %86 : vector<8x16xf32>
    %88 = vector.extract_strided_slice %80 {offsets = [0, 0], sizes = [8, 1], strides = [1, 1]} : vector<8x2xf32> to vector<8x1xf32>
    %89 = vector.broadcast %88 : vector<8x1xf32> to vector<8x16xf32>
    %90 = arith.mulf %89, %87 : vector<8x16xf32>
    %91 = arith.addf %81, %90 : vector<8x16xf32>
    %c0_34 = arith.constant 0 : index
    %c48 = arith.constant 48 : index
    %92 = vector.load %arg3[%c0_34, %c48] : memref<8x128xf32, #tpu.memory_space<vmem>>, vector<8x16xf32>
    tpu.vector_store %arg3[%c0_34, %c48], %87 {strides = array<i32>} : memref<8x128xf32, #tpu.memory_space<vmem>>, vector<8x16xf32>,
    %cst_35 = arith.constant dense<0.000000e+00> : vector<8x24xf32>
    %93 = tpu.matmul %87, %9, %cst_35 {dimension_numbers = #tpu.dot_dimension_numbers<[1], [0], [0], [1], [0, 0, 1, 1], [], []>} : vector<8x16xf32>, vector<16x24xf32>, vector<8x24xf32> -> vector<8x24xf32>
    %94 = vector.extract_strided_slice %70 {offsets = [8, 0], sizes = [8, 24], strides = [1, 1]} : vector<16x24xf32> to vector<8x24xf32>
    %95 = arith.mulf %93, %94 : vector<8x24xf32>
    %cst_36 = arith.constant dense<0.000000e+00> : vector<8x16xf32>
    %96 = tpu.matmul %95, %11, %cst_36 {dimension_numbers = #tpu.dot_dimension_numbers<[1], [0], [0], [1], [0, 0, 1, 1], [], []>} : vector<8x24xf32>, vector<24x16xf32>, vector<8x16xf32> -> vector<8x16xf32>
    %cst_37 = arith.constant 1.000000e+00 : f32
    %97 = vector.broadcast %cst_37 : f32 to vector<8x16xf32>
    %98 = arith.minimumf %96, %97 : vector<8x16xf32>
    %99 = vector.extract_strided_slice %80 {offsets = [0, 1], sizes = [8, 1], strides = [1, 1]} : vector<8x2xf32> to vector<8x1xf32>
    %100 = vector.broadcast %99 : vector<8x1xf32> to vector<8x16xf32>
    %101 = arith.mulf %100, %98 : vector<8x16xf32>
    %102 = arith.addf %91, %101 : vector<8x16xf32>
    %c0_38 = arith.constant 0 : index
    %c64 = arith.constant 64 : index
    %103 = vector.load %arg3[%c0_38, %c64] : memref<8x128xf32, #tpu.memory_space<vmem>>, vector<8x16xf32>
    tpu.vector_store %arg3[%c0_38, %c64], %98 {strides = array<i32>} : memref<8x128xf32, #tpu.memory_space<vmem>>, vector<8x16xf32>,
    %c0_39 = arith.constant 0 : index
    %c0_40 = arith.constant 0 : index
    %104 = vector.load %arg3[%c0_39, %c0_40] : memref<8x128xf32, #tpu.memory_space<vmem>>, vector<8x16xf32>
    tpu.vector_store %arg3[%c0_39, %c0_40], %102 {strides = array<i32>} : memref<8x128xf32, #tpu.memory_space<vmem>>, vector<8x16xf32>,
    %105 = vector.extract_strided_slice %48 {offsets = [0, 0], sizes = [8, 8], strides = [1, 1]} : vector<16x8xf32> to vector<8x8xf32>
    %c0_41 = arith.constant 0 : index
    %c16 = arith.constant 16 : index
    %106 = vector.load %arg3[%c0_41, %c16] : memref<8x128xf32, #tpu.memory_space<vmem>>, vector<8x8xf32>
    tpu.vector_store %arg3[%c0_41, %c16], %105 {strides = array<i32>} : memref<8x128xf32, #tpu.memory_space<vmem>>, vector<8x8xf32>,
    %107 = vector.extract_strided_slice %69 {offsets = [0, 0], sizes = [8, 8], strides = [1, 1]} : vector<16x8xf32> to vector<8x8xf32>
    %c0_42 = arith.constant 0 : index
    %c32_43 = arith.constant 32 : index
    %108 = vector.load %arg3[%c0_42, %c32_43] : memref<8x128xf32, #tpu.memory_space<vmem>>, vector<8x8xf32>
    tpu.vector_store %arg3[%c0_42, %c32_43], %107 {strides = array<i32>} : memref<8x128xf32, #tpu.memory_space<vmem>>, vector<8x8xf32>,
    %109 = vector.extract_strided_slice %48 {offsets = [8, 0], sizes = [8, 8], strides = [1, 1]} : vector<16x8xf32> to vector<8x8xf32>
    %c0_44 = arith.constant 0 : index
    %c24 = arith.constant 24 : index
    %110 = vector.load %arg3[%c0_44, %c24] : memref<8x128xf32, #tpu.memory_space<vmem>>, vector<8x8xf32>
    tpu.vector_store %arg3[%c0_44, %c24], %109 {strides = array<i32>} : memref<8x128xf32, #tpu.memory_space<vmem>>, vector<8x8xf32>,
    %111 = vector.extract_strided_slice %69 {offsets = [8, 0], sizes = [8, 8], strides = [1, 1]} : vector<16x8xf32> to vector<8x8xf32>
    %c0_45 = arith.constant 0 : index
    %c40_46 = arith.constant 40 : index
    %112 = vector.load %arg3[%c0_45, %c40_46] : memref<8x128xf32, #tpu.memory_space<vmem>>, vector<8x8xf32>
    tpu.vector_store %arg3[%c0_45, %c40_46], %111 {strides = array<i32>} : memref<8x128xf32, #tpu.memory_space<vmem>>, vector<8x8xf32>,
    %c0_47 = arith.constant 0 : index
    %c80_48 = arith.constant 80 : index
    %113 = vector.load %arg3[%c0_47, %c80_48] : memref<8x128xf32, #tpu.memory_space<vmem>>, vector<8x2xf32>
    tpu.vector_store %arg3[%c0_47, %c80_48], %80 {strides = array<i32>} : memref<8x128xf32, #tpu.memory_space<vmem>>, vector<8x2xf32>,
    return
  }
}

</mosaic_0001>

<llo_original>
// kernel: transfernet_forward.1
$region0: #{transfernet_forward.1}
  #allocation0 [shape = 'u32[]', space=smem, size = 0x4, offset = 0x4, fixed_abs, tag = 'smem constant byte address 0x4 - core index']
  #allocation1 [shape = 'u32[144,128]{1,0:T(1,128)}', space=vmem, size = 0x12000, scoped, tag = 'internal scratch']
  %s0 = inlined_call_operand.vmem [shape: f32[8,128], index: 0, kind: input, shape index: {}]
  %s1 = inlined_call_operand.hbm [shape: f32[8,8,32], index: 1, kind: input, shape index: {}]
  %s2 = inlined_call_operand.vmem [shape: f32[128,128], index: 2, kind: input, shape index: {}]
  %s3 = inlined_call_operand.vmem [shape: f32[8,128], index: 3, kind: output, shape index: {}]
  %s4 = sld [smem:[#allocation0]]
  $region26: #{transfernet_forward.1} parent=0
    _
  %s6 = ssub.s32 1, %s4
  %s7 = scalar_select 0, %s6, %s4
  $region1: #{transfernet_forward.1} parent=0
    #allocation2 [shape = 'u8[32768]{0}', space=vmem, size = 0x8000, scoped, tag = 'input window, operand 1, single buffered']
    #allocation3 [shape = 's32[1]{0}', space=sflag, size = 0x4, scoped, tag = 'scoped memory for transfernet_forward.1']
    %8 = vsyncpa [#allocation3], 0
    // Predicated region
    $region2: #{transfernet_forward.1} parent=1 // pred_check
      _
    $region3: #{transfernet_forward.1} parent=1 // pred_check_branch
      %10 = sbr.rel (0) target = $region5
    $region4: #{transfernet_forward.1} parent=1 // pred_region
      _
    $region5: #{transfernet_forward.1} parent=1 // pred_fallthru
      _
    // Predicated region
    $region6: #{transfernet_forward.1} parent=1 // pred_check
      _
    $region7: #{transfernet_forward.1} parent=1 // pred_check_branch
      %12 = sbr.rel (0) target = $region9
    $region8: #{transfernet_forward.1} parent=1 // pred_region
      %s14 = ssub.s32 1024, 1024
      %15 = vsyncadd [#allocation3], %s14
      %s16 = sshll.u32 [#allocation2], 4
      %s17 = int_to_ptr.vmem [resolvable:$true] %s16
      %22 = dma.hbm_to_vmem [thread:$0]  %s1, 1024, %s17, [#allocation3], 128, 128, 8
    $region9: #{transfernet_forward.1} parent=1 // pred_fallthru
      _
    // Predicated region
    $region10: #{transfernet_forward.1} parent=1 // pred_check
      _
    $region11: #{transfernet_forward.1} parent=1 // pred_check_branch
      %24 = sbr.rel (0) target = $region13
    $region12: #{transfernet_forward.1} parent=1 // pred_region
      _
    $region13: #{transfernet_forward.1} parent=1 // pred_fallthru
      _
    // Predicated region
    $region14: #{transfernet_forward.1} parent=1 // pred_check
      _
    $region15: #{transfernet_forward.1} parent=1 // pred_check_branch
      %26 = sbr.rel (0) target = $region17
    $region16: #{transfernet_forward.1} parent=1 // pred_region
      %27 = dma.done [#allocation3], 1024
    $region17: #{transfernet_forward.1} parent=1 // pred_fallthru
      _
    %v28 = vld [vmem:[%s0] sm:$0xff]
    %v29 = vld [vmem:[#allocation2] sm:$0xff]
    %v30 = vld [vmem:[#allocation2 + $0x8] sm:$0xff]
    %v31 = vld [vmem:[#allocation2 + $0x10] sm:$0xff]
    %v32 = vld [vmem:[#allocation2 + $0x18] sm:$0xff]
    %v33 = vld [vmem:[#allocation2 + $0x20] sm:$0xff]
    %v34 = vld [vmem:[#allocation2 + $0x28] sm:$0xff]
    %v35 = vld [vmem:[#allocation2 + $0x30] sm:$0xff]
    %v36 = vld [vmem:[#allocation2 + $0x38] sm:$0xff]
    %v37 = vld [vmem:[%s2] sm:$0xff]
    %v38 = vld [vmem:[%s2 + $0x8] sm:$0xff]
    %v39 = vld [vmem:[%s2 + $0x10] sm:$0xff]
    %v40 = vld [vmem:[%s2 + $0x18] sm:$0xff]
    %v41 = vld [vmem:[%s2 + $0x20] sm:$0x1]
    %v42 = vld [vmem:[%s2 + $0x28] sm:$0xff]
    %v43 = vld [vmem:[%s2 + $0x30] sm:$0xff]
    %v44 = vld [vmem:[%s2 + $0x38] sm:$0xff]
    %v45 = vld [vmem:[%s2 + $0x40] sm:$0xff]
    %v46 = vld [vmem:[%s2 + $0x48] sm:$0x1]
    %v47 = vld [vmem:[%s2 + $0x50] sm:$0xff]
    %v48 = vld [vmem:[%s2 + $0x58] sm:$0xff]
    %v49 = vld [vmem:[%s2 + $0x60] sm:$0xff]
    %v50 = vld [vmem:[%s2 + $0x68] sm:$0xff]
    %v51 = vld [vmem:[%s2 + $0x70] sm:$0xff]
    %v52 = vld [vmem:[%s2 + $0x78] sm:$0xff]
    %53 = vst [vmem:[%s3] sm:$0xff] 0.0
    %v54 = vlaneseq
    %v55 = vshrl.u32 %v54, 7
    %v56 = vsub.s32 0, %v55
    %v57 = vrot.slane %v41, %v56
    %vm58 = vcmask 261120
    %v60 = vsel %vm58, %v28, 0
    %62 = vmatprep.subr.mxu0 0.0
    %63 = vmatpush1.msra.mxu0 %v37
    %64 = vmatprep.subr.mxu0 0.0
    %65 = vmatpush1.msra.mxu0 %v38
    %66 = vmatprep.subr.mxu0 0.0
    %67 = vmatpush1.msra.mxu0 %v39
    %68 = vmatprep.subr.mxu0 0.0
    %69 = vmatpush1.msra.mxu0 %v40
    %70 = vmatprep.subr.mxu0 0.0
    %71 = vmatpush1.msra.mxu0 0.0
    %72 = vmatprep.subr.mxu0 0.0
    %73 = vmatpush1.msra.mxu0 0.0
    %74 = vmatprep.subr.mxu0 0.0
    %75 = vmatpush1.msra.mxu0 0.0
    %76 = vmatprep.subr.mxu0 0.0
    %77 = vmatpush1.msra.mxu0 0.0
    %78 = vmatprep.subr.mxu0 0.0
    %79 = vmatpush1.msra.mxu0 0.0
    %80 = vmatprep.subr.mxu0 0.0
    %81 = vmatpush1.msra.mxu0 0.0
    %82 = vmatprep.subr.mxu0 0.0
    %83 = vmatpush1.msra.mxu0 0.0
    %84 = vmatprep.subr.mxu0 0.0
    %85 = vmatpush1.msra.mxu0 0.0
    %86 = vmatprep.subr.mxu0 0.0
    %87 = vmatpush1.msra.mxu0 0.0
    %88 = vmatprep.subr.mxu0 0.0
    %89 = vmatpush1.msra.mxu0 0.0
    %90 = vmatprep.subr.mxu0 0.0
    %91 = vmatpush1.msra.mxu0 0.0
    %92 = vmatprep.subr.mxu0 0.0
    %93 = vmatpush1.msra.mxu0 0.0
    %94 = vmatprep.subr.mxu0 0.0
    %95 = vmatpush1.msra.mxu0 0.0
    %96 = vmatprep.subr.mxu0 0.0
    %97 = vmatpush1.msra.mxu0 0.0
    %98 = vmatprep.subr.mxu0 0.0
    %99 = vmatpush1.msra.mxu0 0.0
    %100 = vmatprep.subr.mxu0 0.0
    %101 = vmatpush1.msra.mxu0 0.0
    %102 = vmatprep.subr.mxu0 0.0
    %103 = vmatpush1.msra.mxu0 0.0
    %104 = vmatprep.subr.mxu0 0.0
    %105 = vmatpush1.msra.mxu0 0.0
    %106 = vmatprep.subr.mxu0 0.0
    %107 = vmatpush1.msra.mxu0 0.0
    %108 = vmatprep.subr.mxu0 0.0
    %109 = vmatpush1.msra.mxu0 0.0
    %110 = vmatprep.subr.mxu0 0.0
    %111 = vmatpush1.msra.mxu0 0.0
    %112 = vmatprep.subr.mxu0 0.0
    %113 = vmatpush1.msra.mxu0 0.0
    %114 = vmatprep.subr.mxu0 0.0
    %115 = vmatpush1.msra.mxu0 0.0
    %116 = vmatprep.subr.mxu0 0.0
    %117 = vmatpush1.msra.mxu0 0.0
    %118 = vmatprep.subr.mxu0 0.0
    %119 = vmatpush1.msra.mxu0 0.0
    %120 = vmatprep.subr.mxu0 0.0
    %121 = vmatpush1.msra.mxu0 0.0
    %122 = vmatprep.subr.mxu0 0.0
    %123 = vmatpush1.msra.mxu0 0.0
    %124 = vmatprep.subr.mxu0 0.0
    %125 = vmatpush1.msra.mxu0 0.0
    %126 = vmatprep.mubr.f32.mxu0 0.0
    %127 = vmatmul.mubr.f32.gmra.mrb[0].mxu0 %v60
    %v128 = vpop.f32.mrb[0].mxu0
    %v129 = vadd.f32 %v57, %v128
    %v130 = vpop.f32.mrb[0].mxu0
    %131 = vdwg.mxu0
    %v132 = vtanh.pop %v129
    %v134 = vcombine.high %v132, %v132
    %v136 = vunpack.c.l.s4 1966171168
    %v137 = vunpack.c.0.s8 %v136
    %v138 = vlaneseq
    %v139 = vshrl.u32 %v138, 7
    %v140 = vsub.s32 %v137, %v139
    %v141 = vrot.slane %v132, %v140
    %v143 = vunpack.c.l.s4 1966171168
    %v144 = vunpack.c.0.s8 %v143
    %v145 = vlaneseq
    %v146 = vshrl.u32 %v145, 7
    %v147 = vsub.s32 %v144, %v146
    %v148 = vrot.slane %v134, %v147
    %v149 = vcombine.high %v141, %v141
    %v150 = vcombine.high %v148, %v148
    %v152 = vunpack.c.l.s4 1966171168
    %v153 = vunpack.c.0.s8 %v152
    %v154 = vlaneseq
    %v155 = vshrl.u32 %v154, 7
    %v156 = vsub.s32 %v153, %v155
    %v157 = vrot.slane %v141, %v156
    %v159 = vunpack.c.l.s4 1966171168
    %v160 = vunpack.c.0.s8 %v159
    %v161 = vlaneseq
    %v162 = vshrl.u32 %v161, 7
    %v163 = vsub.s32 %v160, %v162
    %v164 = vrot.slane %v148, %v163
    %v166 = vunpack.c.l.s4 1966171168
    %v167 = vunpack.c.0.s8 %v166
    %v168 = vlaneseq
    %v169 = vshrl.u32 %v168, 7
    %v170 = vsub.s32 %v167, %v169
    %v171 = vrot.slane %v149, %v170
    %v173 = vunpack.c.l.s4 1966171168
    %v174 = vunpack.c.0.s8 %v173
    %v175 = vlaneseq
    %v176 = vshrl.u32 %v175, 7
    %v177 = vsub.s32 %v174, %v176
    %v178 = vrot.slane %v150, %v177
    %v179 = vcombine.high %v157, %v157
    %v180 = vcombine.high %v164, %v164
    %v181 = vcombine.high %v171, %v171
    %v182 = vcombine.high %v178, %v178
    %v183 = vlaneseq
    %v184 = vshrl.u32 %v183, 7
    %v185 = vsub.s32 0, %v184
    %v186 = vrot.slane %v157, %v185
    %v187 = vlaneseq
    %v188 = vshrl.u32 %v187, 7
    %v189 = vsub.s32 0, %v188
    %v190 = vrot.slane %v171, %v189
    %v191 = vlaneseq
    %v192 = vshrl.u32 %v191, 7
    %v193 = vsub.s32 0, %v192
    %v194 = vrot.slane %v179, %v193
    %v195 = vlaneseq
    %v196 = vshrl.u32 %v195, 7
    %v197 = vsub.s32 0, %v196
    %v198 = vrot.slane %v181, %v197
    %v199 = vlaneseq
    %v200 = vshrl.u32 %v199, 7
    %v201 = vsub.s32 0, %v200
    %v202 = vrot.slane %v164, %v201
    %v203 = vlaneseq
    %v204 = vshrl.u32 %v203, 7
    %v205 = vsub.s32 0, %v204
    %v206 = vrot.slane %v178, %v205
    %v207 = vlaneseq
    %v208 = vshrl.u32 %v207, 7
    %v209 = vsub.s32 0, %v208
    %v210 = vrot.slane %v180, %v209
    %v211 = vlaneseq
    %v212 = vshrl.u32 %v211, 7
    %v213 = vsub.s32 0, %v212
    %v214 = vrot.slane %v182, %v213
    %v223 = vmul.f32 %v186, %v29
    %v224 = vmul.f32 %v190, %v30
    %v225 = vmul.f32 %v194, %v31
    %v226 = vmul.f32 %v198, %v32
    %v227 = vmul.f32 %v202, %v33
    %v228 = vmul.f32 %v206, %v34
    %v229 = vmul.f32 %v210, %v35
    %v230 = vmul.f32 %v214, %v36
    %v231 = vsel %vm58, %v223, 0.0
    %232 = vadd.xlane.f32.xlu0 %v231
    %v233 = vpop.xlane.xlu0 %232
    %v234 = vsel %vm58, %v224, 0.0
    %235 = vadd.xlane.f32.xlu0 %v234
    %v236 = vpop.xlane.xlu0 %235
    %v237 = vsel %vm58, %v225, 0.0
    %238 = vadd.xlane.f32.xlu0 %v237
    %v239 = vpop.xlane.xlu0 %238
    %v240 = vsel %vm58, %v226, 0.0
    %241 = vadd.xlane.f32.xlu0 %v240
    %v242 = vpop.xlane.xlu0 %241
    %v243 = vsel %vm58, %v227, 0.0
    %244 = vadd.xlane.f32.xlu0 %v243
    %v245 = vpop.xlane.xlu0 %244
    %v246 = vsel %vm58, %v228, 0.0
    %247 = vadd.xlane.f32.xlu0 %v246
    %v248 = vpop.xlane.xlu0 %247
    %v249 = vsel %vm58, %v229, 0.0
    %250 = vadd.xlane.f32.xlu0 %v249
    %v251 = vpop.xlane.xlu0 %250
    %v252 = vsel %vm58, %v230, 0.0
    %253 = vadd.xlane.f32.xlu0 %v252
    %v254 = vpop.xlane.xlu0 %253
    %263 = vrot.lane.b32.xlu0 %v29, 32
    %v264 = vpop.permute.xlu0 %263
    %265 = vrot.lane.b32.xlu0 %v30, 32
    %v266 = vpop.permute.xlu0 %265
    %267 = vrot.lane.b32.xlu0 %v31, 32
    %v268 = vpop.permute.xlu0 %267
    %269 = vrot.lane.b32.xlu0 %v32, 32
    %v270 = vpop.permute.xlu0 %269
    %271 = vrot.lane.b32.xlu0 %v33, 32
    %v272 = vpop.permute.xlu0 %271
    %273 = vrot.lane.b32.xlu0 %v34, 32
    %v274 = vpop.permute.xlu0 %273
    %275 = vrot.lane.b32.xlu0 %v35, 32
    %v276 = vpop.permute.xlu0 %275
    %277 = vrot.lane.b32.xlu0 %v36, 32
    %v278 = vpop.permute.xlu0 %277
    %v287 = vmul.f32 %v186, %v264
    %v288 = vmul.f32 %v190, %v266
    %v289 = vmul.f32 %v194, %v268
    %v290 = vmul.f32 %v198, %v270
    %v291 = vmul.f32 %v202, %v272
    %v292 = vmul.f32 %v206, %v274
    %v293 = vmul.f32 %v210, %v276
    %v294 = vmul.f32 %v214, %v278
    %303 = vrot.lane.b32.xlu0 %v287, 96
    %v304 = vpop.permute.xlu0 %303
    %305 = vrot.lane.b32.xlu0 %v288, 96
    %v306 = vpop.permute.xlu0 %305
    %307 = vrot.lane.b32.xlu0 %v289, 96
    %v308 = vpop.permute.xlu0 %307
    %309 = vrot.lane.b32.xlu0 %v290, 96
    %v310 = vpop.permute.xlu0 %309
    %311 = vrot.lane.b32.xlu0 %v291, 96
    %v312 = vpop.permute.xlu0 %311
    %313 = vrot.lane.b32.xlu0 %v292, 96
    %v314 = vpop.permute.xlu0 %313
    %315 = vrot.lane.b32.xlu0 %v293, 96
    %v316 = vpop.permute.xlu0 %315
    %317 = vrot.lane.b32.xlu0 %v294, 96
    %v318 = vpop.permute.xlu0 %317
    %v327 = vsel %vm58, %v304, 0.0
    %328 = vadd.xlane.f32.xlu0 %v327
    %v329 = vpop.xlane.xlu0 %328
    %v330 = vsel %vm58, %v306, 0.0
    %331 = vadd.xlane.f32.xlu0 %v330
    %v332 = vpop.xlane.xlu0 %331
    %v333 = vsel %vm58, %v308, 0.0
    %334 = vadd.xlane.f32.xlu0 %v333
    %v335 = vpop.xlane.xlu0 %334
    %v336 = vsel %vm58, %v310, 0.0
    %337 = vadd.xlane.f32.xlu0 %v336
    %v338 = vpop.xlane.xlu0 %337
    %v339 = vsel %vm58, %v312, 0.0
    %340 = vadd.xlane.f32.xlu0 %v339
    %v341 = vpop.xlane.xlu0 %340
    %v342 = vsel %vm58, %v314, 0.0
    %343 = vadd.xlane.f32.xlu0 %v342
    %v344 = vpop.xlane.xlu0 %343
    %v345 = vsel %vm58, %v316, 0.0
    %346 = vadd.xlane.f32.xlu0 %v345
    %v347 = vpop.xlane.xlu0 %346
    %v348 = vsel %vm58, %v318, 0.0
    %349 = vadd.xlane.f32.xlu0 %v348
    %v350 = vpop.xlane.xlu0 %349
    %v359 = vlaneseq
    %v360 = vand.u32 %v359, 127
    %v361 = vlaneseq
    %v362 = vshrl.u32 %v361, 7
    %v363 = vsub.s32 %v360, %v362
    %v364 = vrot.slane %v233, %v363
    %v365 = vlaneseq
    %v366 = vshrl.u32 %v365, 7
    %v367 = vsub.s32 %v360, %v366
    %v368 = vrot.slane %v236, %v367
    %v369 = vlaneseq
    %v370 = vshrl.u32 %v369, 7
    %v371 = vsub.s32 %v360, %v370
    %v372 = vrot.slane %v239, %v371
    %v373 = vlaneseq
    %v374 = vshrl.u32 %v373, 7
    %v375 = vsub.s32 %v360, %v374
    %v376 = vrot.slane %v242, %v375
    %v377 = vlaneseq
    %v378 = vshrl.u32 %v377, 7
    %v379 = vsub.s32 %v360, %v378
    %v380 = vrot.slane %v245, %v379
    %v381 = vlaneseq
    %v382 = vshrl.u32 %v381, 7
    %v383 = vsub.s32 %v360, %v382
    %v384 = vrot.slane %v248, %v383
    %v385 = vlaneseq
    %v386 = vshrl.u32 %v385, 7
    %v387 = vsub.s32 %v360, %v386
    %v388 = vrot.slane %v251, %v387
    %v389 = vlaneseq
    %v390 = vshrl.u32 %v389, 7
    %v391 = vsub.s32 %v360, %v390
    %v392 = vrot.slane %v254, %v391
    %vm393 = vcmask 1041409
    %v394 = vsel %vm393, %v368, %v364
    %vm395 = vcmask 1042434
    %v396 = vsel %vm395, %v372, %v394
    %vm397 = vcmask 1043459
    %v398 = vsel %vm397, %v376, %v396
    %vm399 = vcmask 1044484
    %v400 = vsel %vm399, %v380, %v398
    %vm401 = vcmask 1045509
    %v402 = vsel %vm401, %v384, %v400
    %vm403 = vcmask 1046534
    %v404 = vsel %vm403, %v388, %v402
    %vm405 = vcmask 1047559
    %v406 = vsel %vm405, %v392, %v404
    %v416 = vlaneseq
    %v417 = vshrl.u32 %v416, 7
    %v418 = vsub.s32 %v360, %v417
    %v419 = vrot.slane %v329, %v418
    %v420 = vlaneseq
    %v421 = vshrl.u32 %v420, 7
    %v422 = vsub.s32 %v360, %v421
    %v423 = vrot.slane %v332, %v422
    %v424 = vlaneseq
    %v425 = vshrl.u32 %v424, 7
    %v426 = vsub.s32 %v360, %v425
    %v427 = vrot.slane %v335, %v426
    %v428 = vlaneseq
    %v429 = vshrl.u32 %v428, 7
    %v430 = vsub.s32 %v360, %v429
    %v431 = vrot.slane %v338, %v430
    %v432 = vlaneseq
    %v433 = vshrl.u32 %v432, 7
    %v434 = vsub.s32 %v360, %v433
    %v435 = vrot.slane %v341, %v434
    %v436 = vlaneseq
    %v437 = vshrl.u32 %v436, 7
    %v438 = vsub.s32 %v360, %v437
    %v439 = vrot.slane %v344, %v438
    %v440 = vlaneseq
    %v441 = vshrl.u32 %v440, 7
    %v442 = vsub.s32 %v360, %v441
    %v443 = vrot.slane %v347, %v442
    %v444 = vlaneseq
    %v445 = vshrl.u32 %v444, 7
    %v446 = vsub.s32 %v360, %v445
    %v447 = vrot.slane %v350, %v446
    %v448 = vsel %vm393, %v423, %v419
    %v449 = vsel %vm395, %v427, %v448
    %v450 = vsel %vm397, %v431, %v449
    %v451 = vsel %vm399, %v435, %v450
    %v452 = vsel %vm401, %v439, %v451
    %v453 = vsel %vm403, %v443, %v452
    %v454 = vsel %vm405, %v447, %v453
    %vm456 = vcmask 64512
    %v457 = vsel %vm456, %v406, -inf
    %458 = vmax.xlane.f32.xlu0 %v457
    %v459 = vpop.xlane.xlu0 %458
    %v460 = vsel %vm456, %v454, -inf
    %461 = vmax.xlane.f32.xlu0 %v460
    %v462 = vpop.xlane.xlu0 %461
    %v463 = vsub.f32 %v406, %v459
    %v464 = vsub.f32 %v454, %v462
    %v465 = vmul.f32 %v463, 1.442695
    %v466 = vpow.pop %v465
    %v467 = vmul.f32 %v464, 1.442695
    %v468 = vpow.pop %v467
    %v469 = vsel %vm456, %v466, 0.0
    %470 = vadd.xlane.f32.xlu0 %v469
    %v471 = vpop.xlane.xlu0 %470
    %v472 = vsel %vm456, %v468, 0.0
    %473 = vadd.xlane.f32.xlu0 %v472
    %v474 = vpop.xlane.xlu0 %473
    %v475 = vrcp.pop %v471
    %v476 = vrcp.pop %v474
    %v477 = vmul.f32 %v466, %v475
    %v478 = vmul.f32 %v468, %v476
    %479 = vrot.lane.b32.xlu0 %v28, 96
    %v480 = vpop.permute.xlu0 %479
    %v482 = vmul.f32 %v477, %v480
    %v483 = vmul.f32 %v478, %v480
    %v484 = vsel %vm456, %v482, 0.0
    %485 = vadd.xlane.f32.xlu0 %v484
    %v486 = vpop.xlane.xlu0 %485
    %v487 = vsel %vm456, %v483, 0.0
    %488 = vadd.xlane.f32.xlu0 %v487
    %v489 = vpop.xlane.xlu0 %488
    %v490 = vadd.f32 %v486, 1e-06
    %v491 = vadd.f32 %v489, 1e-06
    %v492 = vrcp.pop %v490
    %v493 = vrcp.pop %v491
    %v494 = vmul.f32 %v482, %v492
    %v495 = vmul.f32 %v483, %v493
    %v496 = vlaneseq
    %v497 = vshrl.u32 %v496, 7
    %v498 = vsub.s32 0, %v497
    %v499 = vrot.slane %v494, %v498
    %501 = vbcast.lane.b32.xlu0 %v499, 256
    %v502 = vpop.permute.xlu0 %501
    %v503 = vlaneseq
    %v504 = vshrl.u32 %v503, 7
    %v505 = vsub.s32 1, %v504
    %v506 = vrot.slane %v494, %v505
    %508 = vbcast.lane.b32.xlu0 %v506, 256
    %v509 = vpop.permute.xlu0 %508
    %v510 = vlaneseq
    %v511 = vshrl.u32 %v510, 7
    %v512 = vsub.s32 2, %v511
    %v513 = vrot.slane %v494, %v512
    %515 = vbcast.lane.b32.xlu0 %v513, 256
    %v516 = vpop.permute.xlu0 %515
    %v517 = vlaneseq
    %v518 = vshrl.u32 %v517, 7
    %v519 = vsub.s32 3, %v518
    %v520 = vrot.slane %v494, %v519
    %522 = vbcast.lane.b32.xlu0 %v520, 256
    %v523 = vpop.permute.xlu0 %522
    %v524 = vlaneseq
    %v525 = vshrl.u32 %v524, 7
    %v526 = vsub.s32 4, %v525
    %v527 = vrot.slane %v494, %v526
    %529 = vbcast.lane.b32.xlu0 %v527, 256
    %v530 = vpop.permute.xlu0 %529
    %v531 = vlaneseq
    %v532 = vshrl.u32 %v531, 7
    %v533 = vsub.s32 5, %v532
    %v534 = vrot.slane %v494, %v533
    %536 = vbcast.lane.b32.xlu0 %v534, 256
    %v537 = vpop.permute.xlu0 %536
    %v538 = vlaneseq
    %v539 = vshrl.u32 %v538, 7
    %v540 = vsub.s32 6, %v539
    %v541 = vrot.slane %v494, %v540
    %543 = vbcast.lane.b32.xlu0 %v541, 256
    %v544 = vpop.permute.xlu0 %543
    %v545 = vlaneseq
    %v546 = vshrl.u32 %v545, 7
    %v547 = vsub.s32 7, %v546
    %v548 = vrot.slane %v494, %v547
    %550 = vbcast.lane.b32.xlu0 %v548, 256
    %v551 = vpop.permute.xlu0 %550
    %v552 = vmul.f32 %v502, %v29
    %v553 = vmul.f32 %v509, %v30
    %v554 = vmul.f32 %v516, %v31
    %v555 = vmul.f32 %v523, %v32
    %v556 = vmul.f32 %v530, %v33
    %v557 = vmul.f32 %v537, %v34
    %v558 = vmul.f32 %v544, %v35
    %v559 = vmul.f32 %v551, %v36
    %v560 = vsel %vm58, %v552, 0.0
    %v561 = vrot.slane %v560, 4
    %v562 = vadd.f32 %v560, %v561
    %v563 = vrot.slane %v562, 2
    %v564 = vadd.f32 %v562, %v563
    %v565 = vrot.slane %v564, 1
    %v566 = vadd.f32 %v564, %v565
    %v567 = vsel %vm58, %v553, 0.0
    %v568 = vrot.slane %v567, 4
    %v569 = vadd.f32 %v567, %v568
    %v570 = vrot.slane %v569, 2
    %v571 = vadd.f32 %v569, %v570
    %v572 = vrot.slane %v571, 1
    %v573 = vadd.f32 %v571, %v572
    %v574 = vsel %vm58, %v554, 0.0
    %v575 = vrot.slane %v574, 4
    %v576 = vadd.f32 %v574, %v575
    %v577 = vrot.slane %v576, 2
    %v578 = vadd.f32 %v576, %v577
    %v579 = vrot.slane %v578, 1
    %v580 = vadd.f32 %v578, %v579
    %v581 = vsel %vm58, %v555, 0.0
    %v582 = vrot.slane %v581, 4
    %v583 = vadd.f32 %v581, %v582
    %v584 = vrot.slane %v583, 2
    %v585 = vadd.f32 %v583, %v584
    %v586 = vrot.slane %v585, 1
    %v587 = vadd.f32 %v585, %v586
    %v588 = vsel %vm58, %v556, 0.0
    %v589 = vrot.slane %v588, 4
    %v590 = vadd.f32 %v588, %v589
    %v591 = vrot.slane %v590, 2
    %v592 = vadd.f32 %v590, %v591
    %v593 = vrot.slane %v592, 1
    %v594 = vadd.f32 %v592, %v593
    %v595 = vsel %vm58, %v557, 0.0
    %v596 = vrot.slane %v595, 4
    %v597 = vadd.f32 %v595, %v596
    %v598 = vrot.slane %v597, 2
    %v599 = vadd.f32 %v597, %v598
    %v600 = vrot.slane %v599, 1
    %v601 = vadd.f32 %v599, %v600
    %v602 = vsel %vm58, %v558, 0.0
    %v603 = vrot.slane %v602, 4
    %v604 = vadd.f32 %v602, %v603
    %v605 = vrot.slane %v604, 2
    %v606 = vadd.f32 %v604, %v605
    %v607 = vrot.slane %v606, 1
    %v608 = vadd.f32 %v606, %v607
    %v609 = vsel %vm58, %v559, 0.0
    %v610 = vrot.slane %v609, 4
    %v611 = vadd.f32 %v609, %v610
    %v612 = vrot.slane %v611, 2
    %v613 = vadd.f32 %v611, %v612
    %v614 = vrot.slane %v613, 1
    %v615 = vadd.f32 %v613, %v614
    %v616 = vlaneseq
    %v617 = vshrl.u32 %v616, 7
    %v618 = vsub.s32 0, %v617
    %v619 = vrot.slane %v495, %v618
    %621 = vbcast.lane.b32.xlu0 %v619, 256
    %v622 = vpop.permute.xlu0 %621
    %v623 = vlaneseq
    %v624 = vshrl.u32 %v623, 7
    %v625 = vsub.s32 1, %v624
    %v626 = vrot.slane %v495, %v625
    %628 = vbcast.lane.b32.xlu0 %v626, 256
    %v629 = vpop.permute.xlu0 %628
    %v630 = vlaneseq
    %v631 = vshrl.u32 %v630, 7
    %v632 = vsub.s32 2, %v631
    %v633 = vrot.slane %v495, %v632
    %635 = vbcast.lane.b32.xlu0 %v633, 256
    %v636 = vpop.permute.xlu0 %635
    %v637 = vlaneseq
    %v638 = vshrl.u32 %v637, 7
    %v639 = vsub.s32 3, %v638
    %v640 = vrot.slane %v495, %v639
    %642 = vbcast.lane.b32.xlu0 %v640, 256
    %v643 = vpop.permute.xlu0 %642
    %v644 = vlaneseq
    %v645 = vshrl.u32 %v644, 7
    %v646 = vsub.s32 4, %v645
    %v647 = vrot.slane %v495, %v646
    %649 = vbcast.lane.b32.xlu0 %v647, 256
    %v650 = vpop.permute.xlu0 %649
    %v651 = vlaneseq
    %v652 = vshrl.u32 %v651, 7
    %v653 = vsub.s32 5, %v652
    %v654 = vrot.slane %v495, %v653
    %656 = vbcast.lane.b32.xlu0 %v654, 256
    %v657 = vpop.permute.xlu0 %656
    %v658 = vlaneseq
    %v659 = vshrl.u32 %v658, 7
    %v660 = vsub.s32 6, %v659
    %v661 = vrot.slane %v495, %v660
    %663 = vbcast.lane.b32.xlu0 %v661, 256
    %v664 = vpop.permute.xlu0 %663
    %v665 = vlaneseq
    %v666 = vshrl.u32 %v665, 7
    %v667 = vsub.s32 7, %v666
    %v668 = vrot.slane %v495, %v667
    %670 = vbcast.lane.b32.xlu0 %v668, 256
    %v671 = vpop.permute.xlu0 %670
    %v672 = vmul.f32 %v622, %v29
    %v673 = vmul.f32 %v629, %v30
    %v674 = vmul.f32 %v636, %v31
    %v675 = vmul.f32 %v643, %v32
    %v676 = vmul.f32 %v650, %v33
    %v677 = vmul.f32 %v657, %v34
    %v678 = vmul.f32 %v664, %v35
    %v679 = vmul.f32 %v671, %v36
    %v680 = vsel %vm58, %v672, 0.0
    %v681 = vrot.slane %v680, 4
    %v682 = vadd.f32 %v680, %v681
    %v683 = vrot.slane %v682, 2
    %v684 = vadd.f32 %v682, %v683
    %v685 = vrot.slane %v684, 1
    %v686 = vadd.f32 %v684, %v685
    %v687 = vsel %vm58, %v673, 0.0
    %v688 = vrot.slane %v687, 4
    %v689 = vadd.f32 %v687, %v688
    %v690 = vrot.slane %v689, 2
    %v691 = vadd.f32 %v689, %v690
    %v692 = vrot.slane %v691, 1
    %v693 = vadd.f32 %v691, %v692
    %v694 = vsel %vm58, %v674, 0.0
    %v695 = vrot.slane %v694, 4
    %v696 = vadd.f32 %v694, %v695
    %v697 = vrot.slane %v696, 2
    %v698 = vadd.f32 %v696, %v697
    %v699 = vrot.slane %v698, 1
    %v700 = vadd.f32 %v698, %v699
    %v701 = vsel %vm58, %v675, 0.0
    %v702 = vrot.slane %v701, 4
    %v703 = vadd.f32 %v701, %v702
    %v704 = vrot.slane %v703, 2
    %v705 = vadd.f32 %v703, %v704
    %v706 = vrot.slane %v705, 1
    %v707 = vadd.f32 %v705, %v706
    %v708 = vsel %vm58, %v676, 0.0
    %v709 = vrot.slane %v708, 4
    %v710 = vadd.f32 %v708, %v709
    %v711 = vrot.slane %v710, 2
    %v712 = vadd.f32 %v710, %v711
    %v713 = vrot.slane %v712, 1
    %v714 = vadd.f32 %v712, %v713
    %v715 = vsel %vm58, %v677, 0.0
    %v716 = vrot.slane %v715, 4
    %v717 = vadd.f32 %v715, %v716
    %v718 = vrot.slane %v717, 2
    %v719 = vadd.f32 %v717, %v718
    %v720 = vrot.slane %v719, 1
    %v721 = vadd.f32 %v719, %v720
    %v722 = vsel %vm58, %v678, 0.0
    %v723 = vrot.slane %v722, 4
    %v724 = vadd.f32 %v722, %v723
    %v725 = vrot.slane %v724, 2
    %v726 = vadd.f32 %v724, %v725
    %v727 = vrot.slane %v726, 1
    %v728 = vadd.f32 %v726, %v727
    %v729 = vsel %vm58, %v679, 0.0
    %v730 = vrot.slane %v729, 4
    %v731 = vadd.f32 %v729, %v730
    %v732 = vrot.slane %v731, 2
    %v733 = vadd.f32 %v731, %v732
    %v734 = vrot.slane %v733, 1
    %v735 = vadd.f32 %v733, %v734
    %v744 = vsel %vm393, %v573, %v566
    %v745 = vsel %vm395, %v580, %v744
    %v746 = vsel %vm397, %v587, %v745
    %v747 = vsel %vm399, %v594, %v746
    %v748 = vsel %vm401, %v601, %v747
    %v749 = vsel %vm403, %v608, %v748
    %v750 = vsel %vm405, %v615, %v749
    %v759 = vsel %vm393, %v693, %v686
    %v760 = vsel %vm395, %v700, %v759
    %v761 = vsel %vm397, %v707, %v760
    %v762 = vsel %vm399, %v714, %v761
    %v763 = vsel %vm401, %v721, %v762
    %v764 = vsel %vm403, %v728, %v763
    %v765 = vsel %vm405, %v735, %v764
    %v766 = vlaneseq
    %v767 = vshrl.u32 %v766, 7
    %v768 = vsub.s32 0, %v767
    %v769 = vrot.slane %v46, %v768
    %v770 = vsel %vm58, %v750, 0
    %v772 = vsel %vm58, %v765, 0
    %774 = vmatprep.subr.mxu0 0.0
    %775 = vmatpush1.msra.mxu0 %v42
    %776 = vmatprep.subr.mxu0 0.0
    %777 = vmatpush1.msra.mxu0 %v43
    %778 = vmatprep.subr.mxu0 0.0
    %779 = vmatpush1.msra.mxu0 %v44
    %780 = vmatprep.subr.mxu0 0.0
    %781 = vmatpush1.msra.mxu0 %v45
    %782 = vmatprep.subr.mxu0 0.0
    %783 = vmatpush1.msra.mxu0 0.0
    %784 = vmatprep.subr.mxu0 0.0
    %785 = vmatpush1.msra.mxu0 0.0
    %786 = vmatprep.subr.mxu0 0.0
    %787 = vmatpush1.msra.mxu0 0.0
    %788 = vmatprep.subr.mxu0 0.0
    %789 = vmatpush1.msra.mxu0 0.0
    %790 = vmatprep.subr.mxu0 0.0
    %791 = vmatpush1.msra.mxu0 0.0
    %792 = vmatprep.subr.mxu0 0.0
    %793 = vmatpush1.msra.mxu0 0.0
    %794 = vmatprep.subr.mxu0 0.0
    %795 = vmatpush1.msra.mxu0 0.0
    %796 = vmatprep.subr.mxu0 0.0
    %797 = vmatpush1.msra.mxu0 0.0
    %798 = vmatprep.subr.mxu0 0.0
    %799 = vmatpush1.msra.mxu0 0.0
    %800 = vmatprep.subr.mxu0 0.0
    %801 = vmatpush1.msra.mxu0 0.0
    %802 = vmatprep.subr.mxu0 0.0
    %803 = vmatpush1.msra.mxu0 0.0
    %804 = vmatprep.subr.mxu0 0.0
    %805 = vmatpush1.msra.mxu0 0.0
    %806 = vmatprep.subr.mxu0 0.0
    %807 = vmatpush1.msra.mxu0 0.0
    %808 = vmatprep.subr.mxu0 0.0
    %809 = vmatpush1.msra.mxu0 0.0
    %810 = vmatprep.subr.mxu0 0.0
    %811 = vmatpush1.msra.mxu0 0.0
    %812 = vmatprep.subr.mxu0 0.0
    %813 = vmatpush1.msra.mxu0 0.0
    %814 = vmatprep.subr.mxu0 0.0
    %815 = vmatpush1.msra.mxu0 0.0
    %816 = vmatprep.subr.mxu0 0.0
    %817 = vmatpush1.msra.mxu0 0.0
    %818 = vmatprep.subr.mxu0 0.0
    %819 = vmatpush1.msra.mxu0 0.0
    %820 = vmatprep.subr.mxu0 0.0
    %821 = vmatpush1.msra.mxu0 0.0
    %822 = vmatprep.subr.mxu0 0.0
    %823 = vmatpush1.msra.mxu0 0.0
    %824 = vmatprep.subr.mxu0 0.0
    %825 = vmatpush1.msra.mxu0 0.0
    %826 = vmatprep.subr.mxu0 0.0
    %827 = vmatpush1.msra.mxu0 0.0
    %828 = vmatprep.subr.mxu0 0.0
    %829 = vmatpush1.msra.mxu0 0.0
    %830 = vmatprep.subr.mxu0 0.0
    %831 = vmatpush1.msra.mxu0 0.0
    %832 = vmatprep.subr.mxu0 0.0
    %833 = vmatpush1.msra.mxu0 0.0
    %834 = vmatprep.subr.mxu0 0.0
    %835 = vmatpush1.msra.mxu0 0.0
    %836 = vmatprep.subr.mxu0 0.0
    %837 = vmatpush1.msra.mxu0 0.0
    %838 = vmatprep.mubr.f32.mxu0 0.0
    %839 = vmatmul.mubr.f32.gmra.mrb[0].mxu0 %v770
    %v840 = vpop.f32.mrb[0].mxu0
    %v841 = vadd.f32 %v769, %v840
    %v842 = vpop.f32.mrb[0].mxu0
    %843 = vmatprep.mubr.f32.mxu0 0.0
    %844 = vmatmul.mubr.f32.gmra.mrb[0].mxu0 %v772
    %v845 = vpop.f32.mrb[0].mxu0
    %v846 = vadd.f32 %v769, %v845
    %v847 = vpop.f32.mrb[0].mxu0
    %848 = vdwg.mxu0
    %v849 = vmul.f32 %v841, 0.5
    %v850 = vmul.f32 %v846, 0.5
    %v851 = vtanh.pop %v849
    %v852 = vtanh.pop %v850
    %v853 = vmul.f32 %v851, 0.5
    %v854 = vmul.f32 %v852, 0.5
    %v855 = vadd.f32 %v853, 0.5
    %v856 = vadd.f32 %v854, 0.5
    %v858 = vsel %vm456, %v855, 0
    %v861 = vsel %vm456, %v856, 0
    %863 = vmatprep.subr.mxu0 0.0
    %864 = vmatpush1.msra.mxu0 %v49
    %865 = vmatprep.subr.mxu0 0.0
    %866 = vmatpush1.msra.mxu0 0.0
    %867 = vmatprep.subr.mxu0 0.0
    %868 = vmatpush1.msra.mxu0 0.0
    %869 = vmatprep.subr.mxu0 0.0
    %870 = vmatpush1.msra.mxu0 0.0
    %871 = vmatprep.subr.mxu0 0.0
    %872 = vmatpush1.msra.mxu0 0.0
    %873 = vmatprep.subr.mxu0 0.0
    %874 = vmatpush1.msra.mxu0 0.0
    %875 = vmatprep.subr.mxu0 0.0
    %876 = vmatpush1.msra.mxu0 0.0
    %877 = vmatprep.subr.mxu0 0.0
    %878 = vmatpush1.msra.mxu0 0.0
    %879 = vmatprep.subr.mxu0 0.0
    %880 = vmatpush1.msra.mxu0 0.0
    %881 = vmatprep.subr.mxu0 0.0
    %882 = vmatpush1.msra.mxu0 0.0
    %883 = vmatprep.subr.mxu0 0.0
    %884 = vmatpush1.msra.mxu0 0.0
    %885 = vmatprep.subr.mxu0 0.0
    %886 = vmatpush1.msra.mxu0 0.0
    %887 = vmatprep.subr.mxu0 0.0
    %888 = vmatpush1.msra.mxu0 0.0
    %889 = vmatprep.subr.mxu0 0.0
    %890 = vmatpush1.msra.mxu0 0.0
    %891 = vmatprep.subr.mxu0 0.0
    %892 = vmatpush1.msra.mxu0 0.0
    %893 = vmatprep.subr.mxu0 0.0
    %894 = vmatpush1.msra.mxu0 0.0
    %895 = vmatprep.subr.mxu0 0.0
    %896 = vmatpush1.msra.mxu0 0.0
    %897 = vmatprep.subr.mxu0 0.0
    %898 = vmatpush1.msra.mxu0 0.0
    %899 = vmatprep.subr.mxu0 0.0
    %900 = vmatpush1.msra.mxu0 0.0
    %901 = vmatprep.subr.mxu0 0.0
    %902 = vmatpush1.msra.mxu0 0.0
    %903 = vmatprep.subr.mxu0 0.0
    %904 = vmatpush1.msra.mxu0 0.0
    %905 = vmatprep.subr.mxu0 0.0
    %906 = vmatpush1.msra.mxu0 0.0
    %907 = vmatprep.subr.mxu0 0.0
    %908 = vmatpush1.msra.mxu0 0.0
    %909 = vmatprep.subr.mxu0 0.0
    %910 = vmatpush1.msra.mxu0 0.0
    %911 = vmatprep.subr.mxu0 0.0
    %912 = vmatpush1.msra.mxu0 0.0
    %913 = vmatprep.subr.mxu0 0.0
    %914 = vmatpush1.msra.mxu0 0.0
    %915 = vmatprep.subr.mxu0 0.0
    %916 = vmatpush1.msra.mxu0 0.0
    %917 = vmatprep.subr.mxu0 0.0
    %918 = vmatpush1.msra.mxu0 0.0
    %919 = vmatprep.subr.mxu0 0.0
    %920 = vmatpush1.msra.mxu0 0.0
    %921 = vmatprep.subr.mxu0 0.0
    %922 = vmatpush1.msra.mxu0 0.0
    %923 = vmatprep.subr.mxu0 0.0
    %924 = vmatpush1.msra.mxu0 0.0
    %925 = vmatprep.subr.mxu0 0.0
    %926 = vmatpush1.msra.mxu0 0.0
    %927 = vmatprep.mubr.f32.mxu0 0.0
    %928 = vmatmul.mubr.f32.gmra.mrb[0].mxu0 %v858
    %v929 = vpop.f32.mrb[0].mxu0
    %v930 = vadd.f32 0.0, %v929
    %v931 = vpop.f32.mrb[0].mxu0
    %932 = vmatprep.mubr.f32.mxu0 0.0
    %933 = vmatmul.mubr.f32.gmra.mrb[0].mxu0 %v861
    %v934 = vpop.f32.mrb[0].mxu0
    %v935 = vadd.f32 0.0, %v934
    %v936 = vpop.f32.mrb[0].mxu0
    %937 = vdwg.mxu0
    %vm938 = vcmask 540160
    %v939 = vsel %vm938, %v129, -inf
    %940 = vmax.xlane.f32.xlu0 %v939
    %v941 = vpop.xlane.xlu0 %940
    %v942 = vsub.f32 %v129, %v941
    %v943 = vmul.f32 %v942, 1.442695
    %v944 = vpow.pop %v943
    %946 = vrot.lane.b32.xlu0 %v944, 64
    %v947 = vpop.permute.xlu0 %946
    %vm949 = vcmask 15360
    %v950 = vsel %vm949, %v947, 0.0
    %951 = vadd.xlane.f32.xlu0 %v950
    %v952 = vpop.xlane.xlu0 %951
    %v953 = vrcp.pop %v952
    %v954 = vmul.f32 %v944, %v953
    %955 = vrot.lane.b32.xlu0 %v28, 64
    %v956 = vpop.permute.xlu0 %955
    %vm957 = vcmask 130048
    %v958 = vsel %vm957, %v956, 0
    %960 = vmatprep.subr.mxu0 0.0
    %961 = vmatpush1.msra.mxu0 %v47
    %962 = vmatprep.subr.mxu0 0.0
    %963 = vmatpush1.msra.mxu0 %v48
    %964 = vmatprep.subr.mxu0 0.0
    %965 = vmatpush1.msra.mxu0 0.0
    %966 = vmatprep.subr.mxu0 0.0
    %967 = vmatpush1.msra.mxu0 0.0
    %968 = vmatprep.subr.mxu0 0.0
    %969 = vmatpush1.msra.mxu0 0.0
    %970 = vmatprep.subr.mxu0 0.0
    %971 = vmatpush1.msra.mxu0 0.0
    %972 = vmatprep.subr.mxu0 0.0
    %973 = vmatpush1.msra.mxu0 0.0
    %974 = vmatprep.subr.mxu0 0.0
    %975 = vmatpush1.msra.mxu0 0.0
    %976 = vmatprep.subr.mxu0 0.0
    %977 = vmatpush1.msra.mxu0 0.0
    %978 = vmatprep.subr.mxu0 0.0
    %979 = vmatpush1.msra.mxu0 0.0
    %980 = vmatprep.subr.mxu0 0.0
    %981 = vmatpush1.msra.mxu0 0.0
    %982 = vmatprep.subr.mxu0 0.0
    %983 = vmatpush1.msra.mxu0 0.0
    %984 = vmatprep.subr.mxu0 0.0
    %985 = vmatpush1.msra.mxu0 0.0
    %986 = vmatprep.subr.mxu0 0.0
    %987 = vmatpush1.msra.mxu0 0.0
    %988 = vmatprep.subr.mxu0 0.0
    %989 = vmatpush1.msra.mxu0 0.0
    %990 = vmatprep.subr.mxu0 0.0
    %991 = vmatpush1.msra.mxu0 0.0
    %992 = vmatprep.subr.mxu0 0.0
    %993 = vmatpush1.msra.mxu0 0.0
    %994 = vmatprep.subr.mxu0 0.0
    %995 = vmatpush1.msra.mxu0 0.0
    %996 = vmatprep.subr.mxu0 0.0
    %997 = vmatpush1.msra.mxu0 0.0
    %998 = vmatprep.subr.mxu0 0.0
    %999 = vmatpush1.msra.mxu0 0.0
    %1000 = vmatprep.subr.mxu0 0.0
    %1001 = vmatpush1.msra.mxu0 0.0
    %1002 = vmatprep.subr.mxu0 0.0
    %1003 = vmatpush1.msra.mxu0 0.0
    %1004 = vmatprep.subr.mxu0 0.0
    %1005 = vmatpush1.msra.mxu0 0.0
    %1006 = vmatprep.subr.mxu0 0.0
    %1007 = vmatpush1.msra.mxu0 0.0
    %1008 = vmatprep.subr.mxu0 0.0
    %1009 = vmatpush1.msra.mxu0 0.0
    %1010 = vmatprep.subr.mxu0 0.0
    %1011 = vmatpush1.msra.mxu0 0.0
    %1012 = vmatprep.subr.mxu0 0.0
    %1013 = vmatpush1.msra.mxu0 0.0
    %1014 = vmatprep.subr.mxu0 0.0
    %1015 = vmatpush1.msra.mxu0 0.0
    %1016 = vmatprep.subr.mxu0 0.0
    %1017 = vmatpush1.msra.mxu0 0.0
    %1018 = vmatprep.subr.mxu0 0.0
    %1019 = vmatpush1.msra.mxu0 0.0
    %1020 = vmatprep.subr.mxu0 0.0
    %1021 = vmatpush1.msra.mxu0 0.0
    %1022 = vmatprep.subr.mxu0 0.0
    %1023 = vmatpush1.msra.mxu0 0.0
    %1024 = vmatprep.mubr.f32.mxu0 0.0
    %1025 = vmatmul.mubr.f32.gmra.mrb[0].mxu0 %v958
    %v1026 = vpop.f32.mrb[0].mxu0
    %v1027 = vadd.f32 0.0, %v1026
    %v1028 = vpop.f32.mrb[0].mxu0
    %1029 = vdwg.mxu0
    %v1030 = vmul.f32 %v1027, %v930
    %vm1031 = vcmask 195584
    %v1033 = vsel %vm1031, %v1030, 0
    %1035 = vmatprep.subr.mxu0 0.0
    %1036 = vmatpush1.msra.mxu0 %v50
    %1037 = vmatprep.subr.mxu0 0.0
    %1038 = vmatpush1.msra.mxu0 %v51
    %1039 = vmatprep.subr.mxu0 0.0
    %1040 = vmatpush1.msra.mxu0 %v52
    %1041 = vmatprep.subr.mxu0 0.0
    %1042 = vmatpush1.msra.mxu0 0.0
    %1043 = vmatprep.subr.mxu0 0.0
    %1044 = vmatpush1.msra.mxu0 0.0
    %1045 = vmatprep.subr.mxu0 0.0
    %1046 = vmatpush1.msra.mxu0 0.0
    %1047 = vmatprep.subr.mxu0 0.0
    %1048 = vmatpush1.msra.mxu0 0.0
    %1049 = vmatprep.subr.mxu0 0.0
    %1050 = vmatpush1.msra.mxu0 0.0
    %1051 = vmatprep.subr.mxu0 0.0
    %1052 = vmatpush1.msra.mxu0 0.0
    %1053 = vmatprep.subr.mxu0 0.0
    %1054 = vmatpush1.msra.mxu0 0.0
    %1055 = vmatprep.subr.mxu0 0.0
    %1056 = vmatpush1.msra.mxu0 0.0
    %1057 = vmatprep.subr.mxu0 0.0
    %1058 = vmatpush1.msra.mxu0 0.0
    %1059 = vmatprep.subr.mxu0 0.0
    %1060 = vmatpush1.msra.mxu0 0.0
    %1061 = vmatprep.subr.mxu0 0.0
    %1062 = vmatpush1.msra.mxu0 0.0
    %1063 = vmatprep.subr.mxu0 0.0
    %1064 = vmatpush1.msra.mxu0 0.0
    %1065 = vmatprep.subr.mxu0 0.0
    %1066 = vmatpush1.msra.mxu0 0.0
    %1067 = vmatprep.subr.mxu0 0.0
    %1068 = vmatpush1.msra.mxu0 0.0
    %1069 = vmatprep.subr.mxu0 0.0
    %1070 = vmatpush1.msra.mxu0 0.0
    %1071 = vmatprep.subr.mxu0 0.0
    %1072 = vmatpush1.msra.mxu0 0.0
    %1073 = vmatprep.subr.mxu0 0.0
    %1074 = vmatpush1.msra.mxu0 0.0
    %1075 = vmatprep.subr.mxu0 0.0
    %1076 = vmatpush1.msra.mxu0 0.0
    %1077 = vmatprep.subr.mxu0 0.0
    %1078 = vmatpush1.msra.mxu0 0.0
    %1079 = vmatprep.subr.mxu0 0.0
    %1080 = vmatpush1.msra.mxu0 0.0
    %1081 = vmatprep.subr.mxu0 0.0
    %1082 = vmatpush1.msra.mxu0 0.0
    %1083 = vmatprep.subr.mxu0 0.0
    %1084 = vmatpush1.msra.mxu0 0.0
    %1085 = vmatprep.subr.mxu0 0.0
    %1086 = vmatpush1.msra.mxu0 0.0
    %1087 = vmatprep.subr.mxu0 0.0
    %1088 = vmatpush1.msra.mxu0 0.0
    %1089 = vmatprep.subr.mxu0 0.0
    %1090 = vmatpush1.msra.mxu0 0.0
    %1091 = vmatprep.subr.mxu0 0.0
    %1092 = vmatpush1.msra.mxu0 0.0
    %1093 = vmatprep.subr.mxu0 0.0
    %1094 = vmatpush1.msra.mxu0 0.0
    %1095 = vmatprep.subr.mxu0 0.0
    %1096 = vmatpush1.msra.mxu0 0.0
    %1097 = vmatprep.subr.mxu0 0.0
    %1098 = vmatpush1.msra.mxu0 0.0
    %1099 = vmatprep.mubr.f32.mxu0 0.0
    %1100 = vmatmul.mubr.f32.gmra.mrb[0].mxu0 %v1033
    %v1101 = vpop.f32.mrb[0].mxu0
    %v1102 = vadd.f32 0.0, %v1101
    %v1103 = vpop.f32.mrb[0].mxu0
    %1104 = vdwg.mxu0
    %v1105 = vmin.f32 %v1102, 1.0
    %1107 = vset.pattern.permute.xlu0 64
    %1108 = vperm.xlu0 %1107, %v954
    %v1109 = vpop.permute.xlu0 %1108
    %v1111 = vmul.f32 %v1109, %v1105
    %v1112 = vadd.f32 %v1111, 0.0
    %1114 = vrot.lane.b32.xlu0 %v1105, 48
    %v1115 = vpop.permute.xlu0 %1114
    %vm1117 = vcmask 523648
    %1118 = vst.msk [vmem:[%s3] sm:$0xff] %vm1117, %v1115
    %v1119 = vsel %vm957, %v1105, 0
    %1121 = vmatprep.subr.mxu0 0.0
    %1122 = vmatpush1.msra.mxu0 %v47
    %1123 = vmatprep.subr.mxu0 0.0
    %1124 = vmatpush1.msra.mxu0 %v48
    %1125 = vmatprep.subr.mxu0 0.0
    %1126 = vmatpush1.msra.mxu0 0.0
    %1127 = vmatprep.subr.mxu0 0.0
    %1128 = vmatpush1.msra.mxu0 0.0
    %1129 = vmatprep.subr.mxu0 0.0
    %1130 = vmatpush1.msra.mxu0 0.0
    %1131 = vmatprep.subr.mxu0 0.0
    %1132 = vmatpush1.msra.mxu0 0.0
    %1133 = vmatprep.subr.mxu0 0.0
    %1134 = vmatpush1.msra.mxu0 0.0
    %1135 = vmatprep.subr.mxu0 0.0
    %1136 = vmatpush1.msra.mxu0 0.0
    %1137 = vmatprep.subr.mxu0 0.0
    %1138 = vmatpush1.msra.mxu0 0.0
    %1139 = vmatprep.subr.mxu0 0.0
    %1140 = vmatpush1.msra.mxu0 0.0
    %1141 = vmatprep.subr.mxu0 0.0
    %1142 = vmatpush1.msra.mxu0 0.0
    %1143 = vmatprep.subr.mxu0 0.0
    %1144 = vmatpush1.msra.mxu0 0.0
    %1145 = vmatprep.subr.mxu0 0.0
    %1146 = vmatpush1.msra.mxu0 0.0
    %1147 = vmatprep.subr.mxu0 0.0
    %1148 = vmatpush1.msra.mxu0 0.0
    %1149 = vmatprep.subr.mxu0 0.0
    %1150 = vmatpush1.msra.mxu0 0.0
    %1151 = vmatprep.subr.mxu0 0.0
    %1152 = vmatpush1.msra.mxu0 0.0
    %1153 = vmatprep.subr.mxu0 0.0
    %1154 = vmatpush1.msra.mxu0 0.0
    %1155 = vmatprep.subr.mxu0 0.0
    %1156 = vmatpush1.msra.mxu0 0.0
    %1157 = vmatprep.subr.mxu0 0.0
    %1158 = vmatpush1.msra.mxu0 0.0
    %1159 = vmatprep.subr.mxu0 0.0
    %1160 = vmatpush1.msra.mxu0 0.0
    %1161 = vmatprep.subr.mxu0 0.0
    %1162 = vmatpush1.msra.mxu0 0.0
    %1163 = vmatprep.subr.mxu0 0.0
    %1164 = vmatpush1.msra.mxu0 0.0
    %1165 = vmatprep.subr.mxu0 0.0
    %1166 = vmatpush1.msra.mxu0 0.0
    %1167 = vmatprep.subr.mxu0 0.0
    %1168 = vmatpush1.msra.mxu0 0.0
    %1169 = vmatprep.subr.mxu0 0.0
    %1170 = vmatpush1.msra.mxu0 0.0
    %1171 = vmatprep.subr.mxu0 0.0
    %1172 = vmatpush1.msra.mxu0 0.0
    %1173 = vmatprep.subr.mxu0 0.0
    %1174 = vmatpush1.msra.mxu0 0.0
    %1175 = vmatprep.subr.mxu0 0.0
    %1176 = vmatpush1.msra.mxu0 0.0
    %1177 = vmatprep.subr.mxu0 0.0
    %1178 = vmatpush1.msra.mxu0 0.0
    %1179 = vmatprep.subr.mxu0 0.0
    %1180 = vmatpush1.msra.mxu0 0.0
    %1181 = vmatprep.subr.mxu0 0.0
    %1182 = vmatpush1.msra.mxu0 0.0
    %1183 = vmatprep.subr.mxu0 0.0
    %1184 = vmatpush1.msra.mxu0 0.0
    %1185 = vmatprep.mubr.f32.mxu0 0.0
    %1186 = vmatmul.mubr.f32.gmra.mrb[0].mxu0 %v1119
    %v1187 = vpop.f32.mrb[0].mxu0
    %v1188 = vadd.f32 0.0, %v1187
    %v1189 = vpop.f32.mrb[0].mxu0
    %1190 = vdwg.mxu0
    %v1191 = vmul.f32 %v1188, %v935
    %v1193 = vsel %vm1031, %v1191, 0
    %1195 = vmatprep.subr.mxu0 0.0
    %1196 = vmatpush1.msra.mxu0 %v50
    %1197 = vmatprep.subr.mxu0 0.0
    %1198 = vmatpush1.msra.mxu0 %v51
    %1199 = vmatprep.subr.mxu0 0.0
    %1200 = vmatpush1.msra.mxu0 %v52
    %1201 = vmatprep.subr.mxu0 0.0
    %1202 = vmatpush1.msra.mxu0 0.0
    %1203 = vmatprep.subr.mxu0 0.0
    %1204 = vmatpush1.msra.mxu0 0.0
    %1205 = vmatprep.subr.mxu0 0.0
    %1206 = vmatpush1.msra.mxu0 0.0
    %1207 = vmatprep.subr.mxu0 0.0
    %1208 = vmatpush1.msra.mxu0 0.0
    %1209 = vmatprep.subr.mxu0 0.0
    %1210 = vmatpush1.msra.mxu0 0.0
    %1211 = vmatprep.subr.mxu0 0.0
    %1212 = vmatpush1.msra.mxu0 0.0
    %1213 = vmatprep.subr.mxu0 0.0
    %1214 = vmatpush1.msra.mxu0 0.0
    %1215 = vmatprep.subr.mxu0 0.0
    %1216 = vmatpush1.msra.mxu0 0.0
    %1217 = vmatprep.subr.mxu0 0.0
    %1218 = vmatpush1.msra.mxu0 0.0
    %1219 = vmatprep.subr.mxu0 0.0
    %1220 = vmatpush1.msra.mxu0 0.0
    %1221 = vmatprep.subr.mxu0 0.0
    %1222 = vmatpush1.msra.mxu0 0.0
    %1223 = vmatprep.subr.mxu0 0.0
    %1224 = vmatpush1.msra.mxu0 0.0
    %1225 = vmatprep.subr.mxu0 0.0
    %1226 = vmatpush1.msra.mxu0 0.0
    %1227 = vmatprep.subr.mxu0 0.0
    %1228 = vmatpush1.msra.mxu0 0.0
    %1229 = vmatprep.subr.mxu0 0.0
    %1230 = vmatpush1.msra.mxu0 0.0
    %1231 = vmatprep.subr.mxu0 0.0
    %1232 = vmatpush1.msra.mxu0 0.0
    %1233 = vmatprep.subr.mxu0 0.0
    %1234 = vmatpush1.msra.mxu0 0.0
    %1235 = vmatprep.subr.mxu0 0.0
    %1236 = vmatpush1.msra.mxu0 0.0
    %1237 = vmatprep.subr.mxu0 0.0
    %1238 = vmatpush1.msra.mxu0 0.0
    %1239 = vmatprep.subr.mxu0 0.0
    %1240 = vmatpush1.msra.mxu0 0.0
    %1241 = vmatprep.subr.mxu0 0.0
    %1242 = vmatpush1.msra.mxu0 0.0
    %1243 = vmatprep.subr.mxu0 0.0
    %1244 = vmatpush1.msra.mxu0 0.0
    %1245 = vmatprep.subr.mxu0 0.0
    %1246 = vmatpush1.msra.mxu0 0.0
    %1247 = vmatprep.subr.mxu0 0.0
    %1248 = vmatpush1.msra.mxu0 0.0
    %1249 = vmatprep.subr.mxu0 0.0
    %1250 = vmatpush1.msra.mxu0 0.0
    %1251 = vmatprep.subr.mxu0 0.0
    %1252 = vmatpush1.msra.mxu0 0.0
    %1253 = vmatprep.subr.mxu0 0.0
    %1254 = vmatpush1.msra.mxu0 0.0
    %1255 = vmatprep.subr.mxu0 0.0
    %1256 = vmatpush1.msra.mxu0 0.0
    %1257 = vmatprep.subr.mxu0 0.0
    %1258 = vmatpush1.msra.mxu0 0.0
    %1259 = vmatprep.mubr.f32.mxu0 0.0
    %1260 = vmatmul.mubr.f32.gmra.mrb[0].mxu0 %v1193
    %v1261 = vpop.f32.mrb[0].mxu0
    %v1262 = vadd.f32 0.0, %v1261
    %v1263 = vpop.f32.mrb[0].mxu0
    %1264 = vdwg.mxu0
    %v1265 = vmin.f32 %v1262, 1.0
    %1266 = vset.pattern.permute.xlu0 65
    %1267 = vperm.xlu0 %1266, %v954
    %v1268 = vpop.permute.xlu0 %1267
    %v1270 = vmul.f32 %v1268, %v1265
    %v1271 = vadd.f32 %v1112, %v1270
    %1273 = vrot.lane.b32.xlu0 %v1265, 64
    %v1274 = vpop.permute.xlu0 %1273
    %vm1276 = vcmask 654848
    %1277 = vst.msk [vmem:[%s3] sm:$0xff] %vm1276, %v1274
    %1278 = vst.msk [vmem:[%s3] sm:$0xff] %vm957, %v1271
    %1280 = vrot.lane.b32.xlu0 %v494, 16
    %v1281 = vpop.permute.xlu0 %1280
    %vm1283 = vcmask 195712
    %1284 = vst.msk [vmem:[%s3] sm:$0xff] %vm1283, %v1281
    %1285 = vrot.lane.b32.xlu0 %v855, 32
    %v1286 = vpop.permute.xlu0 %1285
    %vm1288 = vcmask 326912
    %1289 = vst.msk [vmem:[%s3] sm:$0xff] %vm1288, %v1286
    %1291 = vrot.lane.b32.xlu0 %v495, 24
    %v1292 = vpop.permute.xlu0 %1291
    %vm1294 = vcmask 261312
    %1295 = vst.msk [vmem:[%s3] sm:$0xff] %vm1294, %v1292
    %1296 = vrot.lane.b32.xlu0 %v856, 40
    %v1297 = vpop.permute.xlu0 %1296
    %vm1299 = vcmask 392512
    %1300 = vst.msk [vmem:[%s3] sm:$0xff] %vm1299, %v1297
    %1301 = vrot.lane.b32.xlu0 %v954, 16
    %v1302 = vpop.permute.xlu0 %1301
    %vm1304 = vcmask 671360
    %1305 = vst.msk [vmem:[%s3] sm:$0xff] %vm1304, %v1302
    // Predicated region
    $region18: #{transfernet_forward.1} parent=1 // pred_check
      _
    $region19: #{transfernet_forward.1} parent=1 // pred_check_branch
      %1307 = sbr.rel (0) target = $region21
    $region20: #{transfernet_forward.1} parent=1 // pred_region
      _
    $region21: #{transfernet_forward.1} parent=1 // pred_fallthru
      _
    // Predicated region
    $region22: #{transfernet_forward.1} parent=1 // pred_check
      _
    $region23: #{transfernet_forward.1} parent=1 // pred_check_branch
      %1309 = sbr.rel (0) target = $region25
    $region24: #{transfernet_forward.1} parent=1 // pred_region
      _
    $region25: #{transfernet_forward.1} parent=1 // pred_fallthru
      _
    %1310 = vsyncpa [#allocation3], 1

</llo_original>
